<compile_context>
chip_gen: v7x
topology: tpu7x:2x2x1
jax: 0.10.0
libtpu: 0.0.40
codegen_flags: <defaults>
</compile_context>

<pallas_src>
import functools
import math

import jax
import jax.numpy as jnp
from jax import lax
from jax.experimental import pallas as pl
from jax.experimental.pallas import tpu as pltpu


# ----------------------------------------------------------------------------
# Kernel: one grid cell = (batch b, ACT step l)
# ----------------------------------------------------------------------------
def _encoder_act_kernel(
    x_ref,                      # (1, S, E)  this batch's raw inputs
    time_ref,                   # (S, H)     timing signal (same every step)
    pos_ref,                    # (1, 1, H)  position signal for step l
    we_ref, be_ref,             # embed Linear: (E, H) bf16, (1, H) f32
    pw_ref, pb_ref,             # ACT p Linear: (H, 1) f32, (1, 1) f32
    ln1g_ref, ln1b_ref,         # LayerNorm 1 (pre-MHA)  (1, H) f32
    ln2g_ref, ln2b_ref,         # LayerNorm 2 (pre-FFN)  (1, H) f32
    wq_ref, wk_ref, wv_ref, wo_ref,   # attention projections, bf16
    w1_ref, b1_ref, w2_ref, b2_ref,   # FFN (bf16 weights, f32 biases)
    out_ref,                    # (1, S, H)  previous_state accumulator / output
    stats_ref,                  # (1, S, 2)  [:, :, 0]=remainders, [:, :, 1]=n_updates
    state_scr,                  # (S, H) f32 persistent ACT state
    halt_scr, rem_scr, nup_scr, # (S, 1) f32 persistent ACT bookkeeping
    *, num_heads, num_layers, threshold, act, eps=1e-6,
):
    f32 = jnp.float32
    bf16 = jnp.bfloat16
    S, H = state_scr.shape
    dk = wq_ref.shape[1]
    dv = wv_ref.shape[1]
    dh_k = dk // num_heads
    dh_v = dv // num_heads
    scale = dh_k ** -0.5

    l = pl.program_id(1)
    last = num_layers - 1

    def layer_norm(x, g_ref, b_ref):
        # MoEL LayerNorm: unbiased (n-1) variance, eps added to the std.
        mean = jnp.mean(x, axis=-1, keepdims=True)
        var = jnp.sum((x - mean) ** 2, axis=-1, keepdims=True) / (H - 1)
        return g_ref[...] * (x - mean) / (jnp.sqrt(var) + eps) + b_ref[...]

    def encoder_layer(x):
        # TODO(synk): EncoderLayer source not in the spec; standard MoEL-style
        # pre-LN MHA + ReLU FFN, no attention mask (ACT_basic calls fn(state)).
        xn = layer_norm(x, ln1g_ref, ln1b_ref).astype(bf16)
        q = jnp.dot(xn, wq_ref[...], preferred_element_type=f32)
        k = jnp.dot(xn, wk_ref[...], preferred_element_type=f32)
        v = jnp.dot(xn, wv_ref[...], preferred_element_type=f32)
        attn = jnp.zeros((S, H), f32)
        for h in range(num_heads):          # static unroll; num_heads is small
            qh = q[:, h * dh_k:(h + 1) * dh_k].astype(bf16)
            kh = k[:, h * dh_k:(h + 1) * dh_k].astype(bf16)
            vh = v[:, h * dh_v:(h + 1) * dh_v].astype(bf16)
            logits = lax.dot_general(qh, kh, (((1,), (1,)), ((), ())),
                                     preferred_element_type=f32) * scale
            m = jnp.max(logits, axis=-1, keepdims=True)           # f32 softmax
            e = jnp.exp(logits - m)
            denom = pl.reciprocal(jnp.sum(e, axis=-1, keepdims=True), approx=True)
            w_att = (e * denom).astype(bf16)
            oh = jnp.dot(w_att, vh, preferred_element_type=f32)   # (S, dh_v)
            # sum_h  o_h @ Wo[h*dh_v:(h+1)*dh_v, :]  ==  concat(o_h) @ Wo
            attn = attn + jnp.dot(oh.astype(bf16),
                                  wo_ref[h * dh_v:(h + 1) * dh_v, :],
                                  preferred_element_type=f32)
        x = x + attn
        xn2 = layer_norm(x, ln2g_ref, ln2b_ref).astype(bf16)
        hmid = jnp.maximum(
            jnp.dot(xn2, w1_ref[...], preferred_element_type=f32) + b1_ref[...],
            0.0)
        return x + jnp.dot(hmid.astype(bf16), w2_ref[...],
                           preferred_element_type=f32) + b2_ref[...]

    # ---- first ACT step for this batch: embedding projection + state init ----
    @pl.when(l == 0)
    def _():
        x = x_ref[0].astype(bf16)                       # (S, E)
        state_scr[...] = (jnp.dot(x, we_ref[...], preferred_element_type=f32)
                          + be_ref[...])
        halt_scr[...] = jnp.zeros((S, 1), f32)
        rem_scr[...] = jnp.zeros((S, 1), f32)
        nup_scr[...] = jnp.zeros((S, 1), f32)
        out_ref[0] = jnp.zeros((S, H), f32)             # previous_state = 0

    # ---- per-step timing + position signal (reference adds both each step) --
    state = state_scr[...] + time_ref[...] + pos_ref[0]

    if act:
        # ACT halting bookkeeping — all f32, exact sigmoid.
        z = jnp.dot(state, pw_ref[...], preferred_element_type=f32) + pb_ref[...]
        p = 1.0 / (1.0 + jnp.exp(-z))
        halting = halt_scr[...]
        still = (halting < 1.0).astype(f32)
        cand = halting + p * still
        new_halted = (cand > threshold).astype(f32) * still
        still = (cand <= threshold).astype(f32) * still
        halting = halting + p * still
        remainders = rem_scr[...] + new_halted * (1.0 - halting)
        halting = halting + new_halted * remainders
        n_updates = nup_scr[...] + still + new_halted
        update_w = p * still + new_halted * remainders

        new_state = encoder_layer(state)
        out_ref[0] = new_state * update_w + out_ref[0] * (1.0 - update_w)

        state_scr[...] = new_state
        halt_scr[...] = halting
        rem_scr[...] = remainders
        nup_scr[...] = n_updates

        @pl.when(l == last)
        def _():
            stats_ref[0, :, 0:1] = remainders
            stats_ref[0, :, 1:2] = n_updates
    else:
        new_state = encoder_layer(state)
        state_scr[...] = new_state

        @pl.when(l == last)
        def _():
            out_ref[0] = new_state
            stats_ref[0] = jnp.zeros((S, 2), f32)


# ----------------------------------------------------------------------------
# Wrapper
# ----------------------------------------------------------------------------
def encoder_forward(params, inputs, mask, *, hidden_size, num_heads, num_layers,
                    timing_signal, position_signal, act=True, threshold=1.0 - 0.1):
    """Encoder.forward (ACT path). `mask` unused: ACT_basic calls fn(state)."""
    del mask  # TODO(synk): reference ACT path never passes the mask to fn.
    B, S, E = inputs.shape
    H = hidden_size
    f32, bf16 = jnp.float32, jnp.bfloat16

    timing = timing_signal[0, :S, :].astype(f32)                    # (S, H)
    pos = position_signal[0].reshape(num_layers, 1, H).astype(f32)  # (L, 1, H)

    def row(v, dt=f32):
        return v.reshape(1, -1).astype(dt)

    args = (
        inputs.astype(f32),                                         # (B, S, E)
        timing, pos,
        params["embed_w"].astype(bf16), row(params["embed_b"]),
        params["p_w"].reshape(H, 1).astype(f32),
        params["p_b"].reshape(1, 1).astype(f32),
        row(params["ln1_g"]), row(params["ln1_b"]),
        row(params["ln2_g"]), row(params["ln2_b"]),
        params["wq"].astype(bf16), params["wk"].astype(bf16),
        params["wv"].astype(bf16), params["wo"].astype(bf16),
        params["ffn_w1"].astype(bf16), row(params["ffn_b1"]),
        params["ffn_w2"].astype(bf16), row(params["ffn_b2"]),
    )

    def resident(shape):
        # Constant block index: DMA'd once, stays resident across the grid.
        return pl.BlockSpec(shape, lambda b, l, _n=len(shape): (0,) * _n)

    in_specs = [
        pl.BlockSpec((1, S, E), lambda b, l: (b, 0, 0)),   # x (per batch)
        resident((S, H)),                                  # timing
        pl.BlockSpec((1, 1, H), lambda b, l: (l, 0, 0)),   # position (per step)
    ] + [resident(a.shape) for a in args[3:]]              # all weights/biases

    out_specs = (
        pl.BlockSpec((1, S, H), lambda b, l: (b, 0, 0)),   # previous_state / output
        pl.BlockSpec((1, S, 2), lambda b, l: (b, 0, 0)),   # packed (remainders, n_updates)
    )

    dk = params["wq"].shape[1]
    dv = params["wv"].shape[1]
    F = params["ffn_w1"].shape[1]
    flops_step = (2 * S * H * (2 * dk + dv)          # q, k, v projections
                  + 2 * S * S * (dk + dv)            # per-batch attention
                  + 2 * S * dv * H                   # output projection
                  + 4 * S * H * F                    # FFN
                  + 2 * S * H)                       # ACT p projection
    cost = pl.CostEstimate(
        flops=int(B * (2 * S * E * H + num_layers * flops_step)),
        transcendentals=int(B * num_layers * (num_heads * S * S + S)),
        bytes_accessed=int(sum(a.size * a.dtype.itemsize for a in args)
                           + B * S * (H + 2) * 4),
    )

    kernel = functools.partial(
        _encoder_act_kernel, num_heads=num_heads, num_layers=num_layers,
        threshold=threshold, act=act)

    out, stats = pl.pallas_call(
        kernel,
        out_shape=(jax.ShapeDtypeStruct((B, S, H), f32),
                   jax.ShapeDtypeStruct((B, S, 2), f32)),
        grid_spec=pltpu.PrefetchScalarGridSpec(
            num_scalar_prefetch=0,
            grid=(B, num_layers),
            in_specs=in_specs,
            out_specs=out_specs,
            scratch_shapes=[
                pltpu.VMEM((S, H), f32),    # state
                pltpu.VMEM((S, 1), f32),    # halting_probability
                pltpu.VMEM((S, 1), f32),    # remainders
                pltpu.VMEM((S, 1), f32),    # n_updates
            ]),
        compiler_params=pltpu.CompilerParams(
            dimension_semantics=("parallel", "arbitrary"),
            vmem_limit_bytes=32 * 1024 * 1024),
        cost_estimate=cost,
    )(*args)

    if act:
        return out, (stats[:, :, 0], stats[:, :, 1]), None
    return out, None, None


# ----------------------------------------------------------------------------
# Parameter / signal construction (host side, tiny)
# ----------------------------------------------------------------------------
def gen_timing_signal(length, channels, min_timescale=1.0, max_timescale=1e4):
    position = jnp.arange(length, dtype=jnp.float32)
    num_timescales = channels // 2
    log_inc = math.log(max_timescale / min_timescale) / max(num_timescales - 1, 1)
    inv_timescales = min_timescale * jnp.exp(
        jnp.arange(num_timescales, dtype=jnp.float32) * -log_inc)
    scaled_time = position[:, None] * inv_timescales[None, :]
    signal = jnp.concatenate([jnp.sin(scaled_time), jnp.cos(scaled_time)], axis=1)
    signal = jnp.pad(signal, ((0, 0), (0, channels % 2)))
    return signal.reshape(1, length, channels)


def init_params(key, embedding_size, hidden_size, total_key_depth,
                total_value_depth, filter_size):
    ks = jax.random.split(key, 8)
    w = lambda k, shape: 0.02 * jax.random.normal(k, shape, dtype=jnp.float32)
    return {
        "embed_w": w(ks[0], (embedding_size, hidden_size)),
        "embed_b": jnp.zeros((hidden_size,), jnp.float32),
        "p_w": w(ks[1], (hidden_size, 1)),
        "p_b": jnp.ones((1,), jnp.float32),          # self.p.bias.data.fill_(1)
        "ln1_g": jnp.ones((hidden_size,), jnp.float32),
        "ln1_b": jnp.zeros((hidden_size,), jnp.float32),
        "ln2_g": jnp.ones((hidden_size,), jnp.float32),
        "ln2_b": jnp.zeros((hidden_size,), jnp.float32),
        "wq": w(ks[2], (hidden_size, total_key_depth)),
        "wk": w(ks[3], (hidden_size, total_key_depth)),
        "wv": w(ks[4], (hidden_size, total_value_depth)),
        "wo": w(ks[5], (total_value_depth, hidden_size)),
        "ffn_w1": w(ks[6], (hidden_size, filter_size)),
        "ffn_b1": jnp.zeros((filter_size,), jnp.float32),
        "ffn_w2": w(ks[7], (filter_size, hidden_size)),
        "ffn_b2": jnp.zeros((hidden_size,), jnp.float32),
    }


# ----------------------------------------------------------------------------
if __name__ == "__main__":
    B, S = 2, 8
    embedding_size, hidden_size = 16, 32     # E != H -> uses self.embed (Linear+bias)
    num_layers, num_heads = 3, 4
    total_key_depth = total_value_depth = 32
    filter_size = 64
    max_length = 200

    key = jax.random.PRNGKey(0)
    k_in, k_par = jax.random.split(key)
    inputs = jax.random.normal(k_in, (B, S, embedding_size), dtype=jnp.float32)
    mask = jnp.zeros((B, 1, S), dtype=jnp.bool_)     # unused on the ACT path

    params = init_params(k_par, embedding_size, hidden_size,
                         total_key_depth, total_value_depth, filter_size)
    timing_signal = gen_timing_signal(max_length, hidden_size)
    position_signal = gen_timing_signal(num_layers, hidden_size)

    out, (remainders, n_updates), _ = encoder_forward(
        params, inputs, mask,
        hidden_size=hidden_size, num_heads=num_heads, num_layers=num_layers,
        timing_signal=timing_signal, position_signal=position_signal, act=True)

    jax.block_until_ready(out)
    jax.block_until_ready(remainders)
    jax.block_until_ready(n_updates)
    assert out.shape == (B, S, hidden_size)
    assert remainders.shape == (B, S) and n_updates.shape == (B, S)
    assert bool(jnp.all(jnp.isfinite(out)))
    assert bool(jnp.all(n_updates >= 1.0)) and bool(jnp.all(n_updates <= num_layers))
    print("KERNEL_OK")
</pallas_src>

<mosaic_0001>
module attributes {stable_mosaic.version = 11 : i64} {
  func.func @_encoder_act_kernel(%arg0: i32, %arg1: i32, %arg2: memref<1x8x16xf32, #tpu.memory_space<vmem>>, %arg3: memref<8x32xf32, #tpu.memory_space<vmem>>, %arg4: memref<1x1x32xf32, #tpu.memory_space<vmem>>, %arg5: memref<16x32xbf16, #tpu.memory_space<vmem>>, %arg6: memref<1x32xf32, #tpu.memory_space<vmem>>, %arg7: memref<32x1xf32, #tpu.memory_space<vmem>>, %arg8: memref<1x1xf32, #tpu.memory_space<vmem>>, %arg9: memref<1x32xf32, #tpu.memory_space<vmem>>, %arg10: memref<1x32xf32, #tpu.memory_space<vmem>>, %arg11: memref<1x32xf32, #tpu.memory_space<vmem>>, %arg12: memref<1x32xf32, #tpu.memory_space<vmem>>, %arg13: memref<32x32xbf16, #tpu.memory_space<vmem>>, %arg14: memref<32x32xbf16, #tpu.memory_space<vmem>>, %arg15: memref<32x32xbf16, #tpu.memory_space<vmem>>, %arg16: memref<32x32xbf16, #tpu.memory_space<vmem>>, %arg17: memref<32x64xbf16, #tpu.memory_space<vmem>>, %arg18: memref<1x64xf32, #tpu.memory_space<vmem>>, %arg19: memref<64x32xbf16, #tpu.memory_space<vmem>>, %arg20: memref<1x32xf32, #tpu.memory_space<vmem>>, %arg21: memref<1x8x32xf32, #tpu.memory_space<vmem>>, %arg22: memref<1x8x2xf32, #tpu.memory_space<vmem>>, %arg23: memref<8x32xf32, #tpu.memory_space<vmem>>, %arg24: memref<8x1xf32, #tpu.memory_space<vmem>>, %arg25: memref<8x1xf32, #tpu.memory_space<vmem>>, %arg26: memref<8x1xf32, #tpu.memory_space<vmem>>) attributes {dimension_semantics = [#tpu.dimension_semantics<parallel>, #tpu.dimension_semantics<arbitrary>], iteration_bounds = array<i64: 2, 3>, scalar_prefetch = 0 : i64, scratch_operands = 4 : i64, tpu.core_type = #tpu.core_type<tc>, window_params = [{transform_indices = @transform_0, window_bounds = array<i64: 1, 8, 16>}, {pipeline_mode = #tpu.pipeline_mode<synchronous>, transform_indices = @transform_1, window_bounds = array<i64: 8, 32>}, {transform_indices = @transform_2, window_bounds = array<i64: 1, 1, 32>}, {pipeline_mode = #tpu.pipeline_mode<synchronous>, transform_indices = @transform_3, window_bounds = array<i64: 16, 32>}, {pipeline_mode = #tpu.pipeline_mode<synchronous>, transform_indices = @transform_4, window_bounds = array<i64: 1, 32>}, {pipeline_mode = #tpu.pipeline_mode<synchronous>, transform_indices = @transform_5, window_bounds = array<i64: 32, 1>}, {pipeline_mode = #tpu.pipeline_mode<synchronous>, transform_indices = @transform_6, window_bounds = array<i64: 1, 1>}, {pipeline_mode = #tpu.pipeline_mode<synchronous>, transform_indices = @transform_7, window_bounds = array<i64: 1, 32>}, {pipeline_mode = #tpu.pipeline_mode<synchronous>, transform_indices = @transform_8, window_bounds = array<i64: 1, 32>}, {pipeline_mode = #tpu.pipeline_mode<synchronous>, transform_indices = @transform_9, window_bounds = array<i64: 1, 32>}, {pipeline_mode = #tpu.pipeline_mode<synchronous>, transform_indices = @transform_10, window_bounds = array<i64: 1, 32>}, {pipeline_mode = #tpu.pipeline_mode<synchronous>, transform_indices = @transform_11, window_bounds = array<i64: 32, 32>}, {pipeline_mode = #tpu.pipeline_mode<synchronous>, transform_indices = @transform_12, window_bounds = array<i64: 32, 32>}, {pipeline_mode = #tpu.pipeline_mode<synchronous>, transform_indices = @transform_13, window_bounds = array<i64: 32, 32>}, {pipeline_mode = #tpu.pipeline_mode<synchronous>, transform_indices = @transform_14, window_bounds = array<i64: 32, 32>}, {pipeline_mode = #tpu.pipeline_mode<synchronous>, transform_indices = @transform_15, window_bounds = array<i64: 32, 64>}, {pipeline_mode = #tpu.pipeline_mode<synchronous>, transform_indices = @transform_16, window_bounds = array<i64: 1, 64>}, {pipeline_mode = #tpu.pipeline_mode<synchronous>, transform_indices = @transform_17, window_bounds = array<i64: 64, 32>}, {pipeline_mode = #tpu.pipeline_mode<synchronous>, transform_indices = @transform_18, window_bounds = array<i64: 1, 32>}, {transform_indices = @transform_19, window_bounds = array<i64: 1, 8, 32>}, {transform_indices = @transform_20, window_bounds = array<i64: 1, 8, 2>}]} {
    %c0_i32 = arith.constant 0 : i32
    %0 = arith.cmpi eq, %arg1, %c0_i32 : i32
    %1 = arith.extui %0 : i1 to i32
    %c0_i32_0 = arith.constant 0 : i32
    %2 = arith.cmpi ne, %1, %c0_i32_0 : i32
    scf.if %2 {
      %c0_108 = arith.constant 0 : index
      %c0_109 = arith.constant 0 : index
      %c0_110 = arith.constant 0 : index
      %245 = vector.load %arg2[%c0_108, %c0_109, %c0_110] : memref<1x8x16xf32, #tpu.memory_space<vmem>>, vector<1x8x16xf32>
      %246 = vector.shape_cast %245 : vector<1x8x16xf32> to vector<8x16xf32>
      %247 = arith.truncf %246 : vector<8x16xf32> to vector<8x16xbf16>
      %c0_111 = arith.constant 0 : index
      %c0_112 = arith.constant 0 : index
      %248 = vector.load %arg5[%c0_111, %c0_112] : memref<16x32xbf16, #tpu.memory_space<vmem>>, vector<16x32xbf16>
      %cst_113 = arith.constant dense<0.000000e+00> : vector<8x32xf32>
      %249 = tpu.matmul %247, %248, %cst_113 {dimension_numbers = #tpu.dot_dimension_numbers<[1], [0], [0], [1], [0, 0, 1, 1], [], []>} : vector<8x16xbf16>, vector<16x32xbf16>, vector<8x32xf32> -> vector<8x32xf32>
      %c0_114 = arith.constant 0 : index
      %c0_115 = arith.constant 0 : index
      %250 = vector.load %arg6[%c0_114, %c0_115] : memref<1x32xf32, #tpu.memory_space<vmem>>, vector<1x32xf32>
      %251 = vector.broadcast %250 : vector<1x32xf32> to vector<8x32xf32>
      %252 = arith.addf %249, %251 : vector<8x32xf32>
      %c0_116 = arith.constant 0 : index
      %c0_117 = arith.constant 0 : index
      %253 = vector.load %arg23[%c0_116, %c0_117] : memref<8x32xf32, #tpu.memory_space<vmem>>, vector<8x32xf32>
      tpu.vector_store %arg23[%c0_116, %c0_117], %252 {strides = array<i32>} : memref<8x32xf32, #tpu.memory_space<vmem>>, vector<8x32xf32>,
      %cst_118 = arith.constant 0.000000e+00 : f32
      %254 = vector.broadcast %cst_118 : f32 to vector<8x1xf32>
      %c0_119 = arith.constant 0 : index
      %c0_120 = arith.constant 0 : index
      %255 = vector.load %arg24[%c0_119, %c0_120] : memref<8x1xf32, #tpu.memory_space<vmem>>, vector<8x1xf32>
      tpu.vector_store %arg24[%c0_119, %c0_120], %254 {strides = array<i32>} : memref<8x1xf32, #tpu.memory_space<vmem>>, vector<8x1xf32>,
      %cst_121 = arith.constant 0.000000e+00 : f32
      %256 = vector.broadcast %cst_121 : f32 to vector<8x1xf32>
      %c0_122 = arith.constant 0 : index
      %c0_123 = arith.constant 0 : index
      %257 = vector.load %arg25[%c0_122, %c0_123] : memref<8x1xf32, #tpu.memory_space<vmem>>, vector<8x1xf32>
      tpu.vector_store %arg25[%c0_122, %c0_123], %256 {strides = array<i32>} : memref<8x1xf32, #tpu.memory_space<vmem>>, vector<8x1xf32>,
      %cst_124 = arith.constant 0.000000e+00 : f32
      %258 = vector.broadcast %cst_124 : f32 to vector<8x1xf32>
      %c0_125 = arith.constant 0 : index
      %c0_126 = arith.constant 0 : index
      %259 = vector.load %arg26[%c0_125, %c0_126] : memref<8x1xf32, #tpu.memory_space<vmem>>, vector<8x1xf32>
      tpu.vector_store %arg26[%c0_125, %c0_126], %258 {strides = array<i32>} : memref<8x1xf32, #tpu.memory_space<vmem>>, vector<8x1xf32>,
      %cst_127 = arith.constant 0.000000e+00 : f32
      %260 = vector.broadcast %cst_127 : f32 to vector<8x32xf32>
      %c0_128 = arith.constant 0 : index
      %c0_129 = arith.constant 0 : index
      %c0_130 = arith.constant 0 : index
      %261 = vector.load %arg21[%c0_128, %c0_129, %c0_130] : memref<1x8x32xf32, #tpu.memory_space<vmem>>, vector<1x8x32xf32>
      %262 = vector.shape_cast %261 : vector<1x8x32xf32> to vector<8x32xf32>
      %263 = vector.shape_cast %260 : vector<8x32xf32> to vector<1x8x32xf32>
      tpu.vector_store %arg21[%c0_128, %c0_129, %c0_130], %263 {strides = array<i32>} : memref<1x8x32xf32, #tpu.memory_space<vmem>>, vector<1x8x32xf32>,
    } else {
    }
    %c0 = arith.constant 0 : index
    %c0_1 = arith.constant 0 : index
    %3 = vector.load %arg23[%c0, %c0_1] : memref<8x32xf32, #tpu.memory_space<vmem>>, vector<8x32xf32>
    %c0_2 = arith.constant 0 : index
    %c0_3 = arith.constant 0 : index
    %4 = vector.load %arg3[%c0_2, %c0_3] : memref<8x32xf32, #tpu.memory_space<vmem>>, vector<8x32xf32>
    %5 = arith.addf %3, %4 : vector<8x32xf32>
    %c0_4 = arith.constant 0 : index
    %c0_5 = arith.constant 0 : index
    %c0_6 = arith.constant 0 : index
    %6 = vector.load %arg4[%c0_4, %c0_5, %c0_6] : memref<1x1x32xf32, #tpu.memory_space<vmem>>, vector<1x1x32xf32>
    %7 = vector.shape_cast %6 : vector<1x1x32xf32> to vector<1x32xf32>
    %8 = vector.broadcast %7 : vector<1x32xf32> to vector<8x32xf32>
    %9 = arith.addf %5, %8 : vector<8x32xf32>
    %c0_7 = arith.constant 0 : index
    %c0_8 = arith.constant 0 : index
    %10 = vector.load %arg7[%c0_7, %c0_8] : memref<32x1xf32, #tpu.memory_space<vmem>>, vector<32x1xf32>
    %cst = arith.constant dense<0.000000e+00> : vector<8x1xf32>
    %11 = tpu.matmul %9, %10, %cst {dimension_numbers = #tpu.dot_dimension_numbers<[1], [0], [0], [1], [0, 0, 1, 1], [], []>} : vector<8x32xf32>, vector<32x1xf32>, vector<8x1xf32> -> vector<8x1xf32>
    %c0_9 = arith.constant 0 : index
    %c0_10 = arith.constant 0 : index
    %12 = vector.load %arg8[%c0_9, %c0_10] : memref<1x1xf32, #tpu.memory_space<vmem>>, vector<1x1xf32>
    %13 = vector.broadcast %12 : vector<1x1xf32> to vector<8x1xf32>
    %14 = arith.addf %11, %13 : vector<8x1xf32>
    %cst_11 = arith.constant 0.000000e+00 : f32
    %15 = vector.broadcast %cst_11 : f32 to vector<8x1xf32>
    %16 = arith.subf %15, %14 : vector<8x1xf32>
    %17 = math.exp %16 : vector<8x1xf32>
    %cst_12 = arith.constant 1.000000e+00 : f32
    %18 = vector.broadcast %cst_12 : f32 to vector<8x1xf32>
    %19 = arith.addf %18, %17 : vector<8x1xf32>
    %cst_13 = arith.constant 1.000000e+00 : f32
    %20 = vector.broadcast %cst_13 : f32 to vector<8x1xf32>
    %21 = arith.divf %20, %19 : vector<8x1xf32>
    %c0_14 = arith.constant 0 : index
    %c0_15 = arith.constant 0 : index
    %22 = vector.load %arg24[%c0_14, %c0_15] : memref<8x1xf32, #tpu.memory_space<vmem>>, vector<8x1xf32>
    %cst_16 = arith.constant 1.000000e+00 : f32
    %23 = vector.broadcast %cst_16 : f32 to vector<8x1xf32>
    %24 = arith.cmpf olt, %22, %23 : vector<8x1xf32>
    %25 = arith.extui %24 : vector<8x1xi1> to vector<8x1xi32>
    %26 = arith.sitofp %25 : vector<8x1xi32> to vector<8x1xf32>
    %27 = arith.mulf %21, %26 : vector<8x1xf32>
    %28 = arith.addf %22, %27 : vector<8x1xf32>
    %cst_17 = arith.constant 0.899999976 : f32
    %29 = vector.broadcast %cst_17 : f32 to vector<8x1xf32>
    %30 = arith.cmpf ogt, %28, %29 : vector<8x1xf32>
    %31 = arith.extui %30 : vector<8x1xi1> to vector<8x1xi32>
    %32 = arith.sitofp %31 : vector<8x1xi32> to vector<8x1xf32>
    %33 = arith.mulf %32, %26 : vector<8x1xf32>
    %cst_18 = arith.constant 0.899999976 : f32
    %34 = vector.broadcast %cst_18 : f32 to vector<8x1xf32>
    %35 = arith.cmpf ole, %28, %34 : vector<8x1xf32>
    %36 = arith.extui %35 : vector<8x1xi1> to vector<8x1xi32>
    %37 = arith.sitofp %36 : vector<8x1xi32> to vector<8x1xf32>
    %38 = arith.mulf %37, %26 : vector<8x1xf32>
    %39 = arith.mulf %21, %38 : vector<8x1xf32>
    %40 = arith.addf %22, %39 : vector<8x1xf32>
    %c0_19 = arith.constant 0 : index
    %c0_20 = arith.constant 0 : index
    %41 = vector.load %arg25[%c0_19, %c0_20] : memref<8x1xf32, #tpu.memory_space<vmem>>, vector<8x1xf32>
    %cst_21 = arith.constant 1.000000e+00 : f32
    %42 = vector.broadcast %cst_21 : f32 to vector<8x1xf32>
    %43 = arith.subf %42, %40 : vector<8x1xf32>
    %44 = arith.mulf %33, %43 : vector<8x1xf32>
    %45 = arith.addf %41, %44 : vector<8x1xf32>
    %46 = arith.mulf %33, %45 : vector<8x1xf32>
    %47 = arith.addf %40, %46 : vector<8x1xf32>
    %c0_22 = arith.constant 0 : index
    %c0_23 = arith.constant 0 : index
    %48 = vector.load %arg26[%c0_22, %c0_23] : memref<8x1xf32, #tpu.memory_space<vmem>>, vector<8x1xf32>
    %49 = arith.addf %48, %38 : vector<8x1xf32>
    %50 = arith.addf %49, %33 : vector<8x1xf32>
    %51 = arith.mulf %21, %38 : vector<8x1xf32>
    %52 = arith.mulf %33, %45 : vector<8x1xf32>
    %53 = arith.addf %51, %52 : vector<8x1xf32>
    %cst_24 = arith.constant dense<0.000000e+00> : vector<8xf32>
    %54 = vector.multi_reduction <add>, %9, %cst_24 [1] : vector<8x32xf32> to vector<8xf32>
    %55 = vector.shape_cast %54 : vector<8xf32> to vector<8x1xf32>
    %cst_25 = arith.constant 3.200000e+01 : f32
    %56 = vector.broadcast %cst_25 : f32 to vector<8x1xf32>
    %57 = arith.divf %55, %56 : vector<8x1xf32>
    %58 = vector.broadcast %57 : vector<8x1xf32> to vector<8x32xf32>
    %59 = arith.subf %9, %58 : vector<8x32xf32>
    %60 = arith.mulf %59, %59 : vector<8x32xf32>
    %cst_26 = arith.constant dense<0.000000e+00> : vector<8xf32>
    %61 = vector.multi_reduction <add>, %60, %cst_26 [1] : vector<8x32xf32> to vector<8xf32>
    %62 = vector.shape_cast %61 : vector<8xf32> to vector<8x1xf32>
    %cst_27 = arith.constant 3.100000e+01 : f32
    %63 = vector.broadcast %cst_27 : f32 to vector<8x1xf32>
    %64 = arith.divf %62, %63 : vector<8x1xf32>
    %c0_28 = arith.constant 0 : index
    %c0_29 = arith.constant 0 : index
    %65 = vector.load %arg9[%c0_28, %c0_29] : memref<1x32xf32, #tpu.memory_space<vmem>>, vector<1x32xf32>
    %66 = vector.broadcast %57 : vector<8x1xf32> to vector<8x32xf32>
    %67 = arith.subf %9, %66 : vector<8x32xf32>
    %68 = vector.broadcast %65 : vector<1x32xf32> to vector<8x32xf32>
    %69 = arith.mulf %68, %67 : vector<8x32xf32>
    %70 = math.sqrt %64 : vector<8x1xf32>
    %cst_30 = arith.constant 9.99999997E-7 : f32
    %71 = vector.broadcast %cst_30 : f32 to vector<8x1xf32>
    %72 = arith.addf %70, %71 : vector<8x1xf32>
    %73 = vector.broadcast %72 : vector<8x1xf32> to vector<8x32xf32>
    %74 = arith.divf %69, %73 : vector<8x32xf32>
    %c0_31 = arith.constant 0 : index
    %c0_32 = arith.constant 0 : index
    %75 = vector.load %arg10[%c0_31, %c0_32] : memref<1x32xf32, #tpu.memory_space<vmem>>, vector<1x32xf32>
    %76 = vector.broadcast %75 : vector<1x32xf32> to vector<8x32xf32>
    %77 = arith.addf %74, %76 : vector<8x32xf32>
    %78 = arith.truncf %77 : vector<8x32xf32> to vector<8x32xbf16>
    %c0_33 = arith.constant 0 : index
    %c0_34 = arith.constant 0 : index
    %79 = vector.load %arg13[%c0_33, %c0_34] : memref<32x32xbf16, #tpu.memory_space<vmem>>, vector<32x32xbf16>
    %cst_35 = arith.constant dense<0.000000e+00> : vector<8x32xf32>
    %80 = tpu.matmul %78, %79, %cst_35 {dimension_numbers = #tpu.dot_dimension_numbers<[1], [0], [0], [1], [0, 0, 1, 1], [], []>} : vector<8x32xbf16>, vector<32x32xbf16>, vector<8x32xf32> -> vector<8x32xf32>
    %c0_36 = arith.constant 0 : index
    %c0_37 = arith.constant 0 : index
    %81 = vector.load %arg14[%c0_36, %c0_37] : memref<32x32xbf16, #tpu.memory_space<vmem>>, vector<32x32xbf16>
    %cst_38 = arith.constant dense<0.000000e+00> : vector<8x32xf32>
    %82 = tpu.matmul %78, %81, %cst_38 {dimension_numbers = #tpu.dot_dimension_numbers<[1], [0], [0], [1], [0, 0, 1, 1], [], []>} : vector<8x32xbf16>, vector<32x32xbf16>, vector<8x32xf32> -> vector<8x32xf32>
    %c0_39 = arith.constant 0 : index
    %c0_40 = arith.constant 0 : index
    %83 = vector.load %arg15[%c0_39, %c0_40] : memref<32x32xbf16, #tpu.memory_space<vmem>>, vector<32x32xbf16>
    %cst_41 = arith.constant dense<0.000000e+00> : vector<8x32xf32>
    %84 = tpu.matmul %78, %83, %cst_41 {dimension_numbers = #tpu.dot_dimension_numbers<[1], [0], [0], [1], [0, 0, 1, 1], [], []>} : vector<8x32xbf16>, vector<32x32xbf16>, vector<8x32xf32> -> vector<8x32xf32>
    %cst_42 = arith.constant 0.000000e+00 : f32
    %85 = vector.broadcast %cst_42 : f32 to vector<8x32xf32>
    %86 = vector.extract_strided_slice %80 {offsets = [0, 0], sizes = [8, 8], strides = [1, 1]} : vector<8x32xf32> to vector<8x8xf32>
    %87 = arith.truncf %86 : vector<8x8xf32> to vector<8x8xbf16>
    %88 = vector.extract_strided_slice %82 {offsets = [0, 0], sizes = [8, 8], strides = [1, 1]} : vector<8x32xf32> to vector<8x8xf32>
    %89 = arith.truncf %88 : vector<8x8xf32> to vector<8x8xbf16>
    %90 = vector.extract_strided_slice %84 {offsets = [0, 0], sizes = [8, 8], strides = [1, 1]} : vector<8x32xf32> to vector<8x8xf32>
    %91 = arith.truncf %90 : vector<8x8xf32> to vector<8x8xbf16>
    %cst_43 = arith.constant dense<0.000000e+00> : vector<8x8xf32>
    %92 = tpu.matmul %87, %89, %cst_43 {dimension_numbers = #tpu.dot_dimension_numbers<[1], [1], [0], [0], [0, 0, 1, 0], [], []>} : vector<8x8xbf16>, vector<8x8xbf16>, vector<8x8xf32> -> vector<8x8xf32>
    %cst_44 = arith.constant 0.353553385 : f32
    %93 = vector.broadcast %cst_44 : f32 to vector<8x8xf32>
    %94 = arith.mulf %92, %93 : vector<8x8xf32>
    %cst_45 = arith.constant dense<0xFF800000> : vector<8xf32>
    %95 = vector.multi_reduction <maximumf>, %94, %cst_45 [1] : vector<8x8xf32> to vector<8xf32>
    %96 = vector.shape_cast %95 : vector<8xf32> to vector<8x1xf32>
    %97 = vector.broadcast %96 : vector<8x1xf32> to vector<8x8xf32>
    %98 = arith.subf %94, %97 : vector<8x8xf32>
    %99 = math.exp %98 : vector<8x8xf32>
    %cst_46 = arith.constant dense<0.000000e+00> : vector<8xf32>
    %100 = vector.multi_reduction <add>, %99, %cst_46 [1] : vector<8x8xf32> to vector<8xf32>
    %101 = vector.shape_cast %100 : vector<8xf32> to vector<8x1xf32>
    %102 = tpu.reciprocal %101 {approx = true} : vector<8x1xf32> -> vector<8x1xf32>
    %103 = vector.broadcast %102 : vector<8x1xf32> to vector<8x8xf32>
    %104 = arith.mulf %99, %103 : vector<8x8xf32>
    %105 = arith.truncf %104 : vector<8x8xf32> to vector<8x8xbf16>
    %cst_47 = arith.constant dense<0.000000e+00> : vector<8x8xf32>
    %106 = tpu.matmul %105, %91, %cst_47 {dimension_numbers = #tpu.dot_dimension_numbers<[1], [0], [0], [1], [0, 0, 1, 1], [], []>} : vector<8x8xbf16>, vector<8x8xbf16>, vector<8x8xf32> -> vector<8x8xf32>
    %107 = arith.truncf %106 : vector<8x8xf32> to vector<8x8xbf16>
    %c0_48 = arith.constant 0 : index
    %c0_49 = arith.constant 0 : index
    %108 = vector.load %arg16[%c0_48, %c0_49] : memref<32x32xbf16, #tpu.memory_space<vmem>>, vector<8x32xbf16>
    %cst_50 = arith.constant dense<0.000000e+00> : vector<8x32xf32>
    %109 = tpu.matmul %107, %108, %cst_50 {dimension_numbers = #tpu.dot_dimension_numbers<[1], [0], [0], [1], [0, 0, 1, 1], [], []>} : vector<8x8xbf16>, vector<8x32xbf16>, vector<8x32xf32> -> vector<8x32xf32>
    %110 = arith.addf %85, %109 : vector<8x32xf32>
    %111 = vector.extract_strided_slice %80 {offsets = [0, 8], sizes = [8, 8], strides = [1, 1]} : vector<8x32xf32> to vector<8x8xf32>
    %112 = arith.truncf %111 : vector<8x8xf32> to vector<8x8xbf16>
    %113 = vector.extract_strided_slice %82 {offsets = [0, 8], sizes = [8, 8], strides = [1, 1]} : vector<8x32xf32> to vector<8x8xf32>
    %114 = arith.truncf %113 : vector<8x8xf32> to vector<8x8xbf16>
    %115 = vector.extract_strided_slice %84 {offsets = [0, 8], sizes = [8, 8], strides = [1, 1]} : vector<8x32xf32> to vector<8x8xf32>
    %116 = arith.truncf %115 : vector<8x8xf32> to vector<8x8xbf16>
    %cst_51 = arith.constant dense<0.000000e+00> : vector<8x8xf32>
    %117 = tpu.matmul %112, %114, %cst_51 {dimension_numbers = #tpu.dot_dimension_numbers<[1], [1], [0], [0], [0, 0, 1, 0], [], []>} : vector<8x8xbf16>, vector<8x8xbf16>, vector<8x8xf32> -> vector<8x8xf32>
    %cst_52 = arith.constant 0.353553385 : f32
    %118 = vector.broadcast %cst_52 : f32 to vector<8x8xf32>
    %119 = arith.mulf %117, %118 : vector<8x8xf32>
    %cst_53 = arith.constant dense<0xFF800000> : vector<8xf32>
    %120 = vector.multi_reduction <maximumf>, %119, %cst_53 [1] : vector<8x8xf32> to vector<8xf32>
    %121 = vector.shape_cast %120 : vector<8xf32> to vector<8x1xf32>
    %122 = vector.broadcast %121 : vector<8x1xf32> to vector<8x8xf32>
    %123 = arith.subf %119, %122 : vector<8x8xf32>
    %124 = math.exp %123 : vector<8x8xf32>
    %cst_54 = arith.constant dense<0.000000e+00> : vector<8xf32>
    %125 = vector.multi_reduction <add>, %124, %cst_54 [1] : vector<8x8xf32> to vector<8xf32>
    %126 = vector.shape_cast %125 : vector<8xf32> to vector<8x1xf32>
    %127 = tpu.reciprocal %126 {approx = true} : vector<8x1xf32> -> vector<8x1xf32>
    %128 = vector.broadcast %127 : vector<8x1xf32> to vector<8x8xf32>
    %129 = arith.mulf %124, %128 : vector<8x8xf32>
    %130 = arith.truncf %129 : vector<8x8xf32> to vector<8x8xbf16>
    %cst_55 = arith.constant dense<0.000000e+00> : vector<8x8xf32>
    %131 = tpu.matmul %130, %116, %cst_55 {dimension_numbers = #tpu.dot_dimension_numbers<[1], [0], [0], [1], [0, 0, 1, 1], [], []>} : vector<8x8xbf16>, vector<8x8xbf16>, vector<8x8xf32> -> vector<8x8xf32>
    %132 = arith.truncf %131 : vector<8x8xf32> to vector<8x8xbf16>
    %c8 = arith.constant 8 : index
    %c0_56 = arith.constant 0 : index
    %133 = vector.load %arg16[%c8, %c0_56] : memref<32x32xbf16, #tpu.memory_space<vmem>>, vector<8x32xbf16>
    %cst_57 = arith.constant dense<0.000000e+00> : vector<8x32xf32>
    %134 = tpu.matmul %132, %133, %cst_57 {dimension_numbers = #tpu.dot_dimension_numbers<[1], [0], [0], [1], [0, 0, 1, 1], [], []>} : vector<8x8xbf16>, vector<8x32xbf16>, vector<8x32xf32> -> vector<8x32xf32>
    %135 = arith.addf %110, %134 : vector<8x32xf32>
    %136 = vector.extract_strided_slice %80 {offsets = [0, 16], sizes = [8, 8], strides = [1, 1]} : vector<8x32xf32> to vector<8x8xf32>
    %137 = arith.truncf %136 : vector<8x8xf32> to vector<8x8xbf16>
    %138 = vector.extract_strided_slice %82 {offsets = [0, 16], sizes = [8, 8], strides = [1, 1]} : vector<8x32xf32> to vector<8x8xf32>
    %139 = arith.truncf %138 : vector<8x8xf32> to vector<8x8xbf16>
    %140 = vector.extract_strided_slice %84 {offsets = [0, 16], sizes = [8, 8], strides = [1, 1]} : vector<8x32xf32> to vector<8x8xf32>
    %141 = arith.truncf %140 : vector<8x8xf32> to vector<8x8xbf16>
    %cst_58 = arith.constant dense<0.000000e+00> : vector<8x8xf32>
    %142 = tpu.matmul %137, %139, %cst_58 {dimension_numbers = #tpu.dot_dimension_numbers<[1], [1], [0], [0], [0, 0, 1, 0], [], []>} : vector<8x8xbf16>, vector<8x8xbf16>, vector<8x8xf32> -> vector<8x8xf32>
    %cst_59 = arith.constant 0.353553385 : f32
    %143 = vector.broadcast %cst_59 : f32 to vector<8x8xf32>
    %144 = arith.mulf %142, %143 : vector<8x8xf32>
    %cst_60 = arith.constant dense<0xFF800000> : vector<8xf32>
    %145 = vector.multi_reduction <maximumf>, %144, %cst_60 [1] : vector<8x8xf32> to vector<8xf32>
    %146 = vector.shape_cast %145 : vector<8xf32> to vector<8x1xf32>
    %147 = vector.broadcast %146 : vector<8x1xf32> to vector<8x8xf32>
    %148 = arith.subf %144, %147 : vector<8x8xf32>
    %149 = math.exp %148 : vector<8x8xf32>
    %cst_61 = arith.constant dense<0.000000e+00> : vector<8xf32>
    %150 = vector.multi_reduction <add>, %149, %cst_61 [1] : vector<8x8xf32> to vector<8xf32>
    %151 = vector.shape_cast %150 : vector<8xf32> to vector<8x1xf32>
    %152 = tpu.reciprocal %151 {approx = true} : vector<8x1xf32> -> vector<8x1xf32>
    %153 = vector.broadcast %152 : vector<8x1xf32> to vector<8x8xf32>
    %154 = arith.mulf %149, %153 : vector<8x8xf32>
    %155 = arith.truncf %154 : vector<8x8xf32> to vector<8x8xbf16>
    %cst_62 = arith.constant dense<0.000000e+00> : vector<8x8xf32>
    %156 = tpu.matmul %155, %141, %cst_62 {dimension_numbers = #tpu.dot_dimension_numbers<[1], [0], [0], [1], [0, 0, 1, 1], [], []>} : vector<8x8xbf16>, vector<8x8xbf16>, vector<8x8xf32> -> vector<8x8xf32>
    %157 = arith.truncf %156 : vector<8x8xf32> to vector<8x8xbf16>
    %c16 = arith.constant 16 : index
    %c0_63 = arith.constant 0 : index
    %158 = vector.load %arg16[%c16, %c0_63] : memref<32x32xbf16, #tpu.memory_space<vmem>>, vector<8x32xbf16>
    %cst_64 = arith.constant dense<0.000000e+00> : vector<8x32xf32>
    %159 = tpu.matmul %157, %158, %cst_64 {dimension_numbers = #tpu.dot_dimension_numbers<[1], [0], [0], [1], [0, 0, 1, 1], [], []>} : vector<8x8xbf16>, vector<8x32xbf16>, vector<8x32xf32> -> vector<8x32xf32>
    %160 = arith.addf %135, %159 : vector<8x32xf32>
    %161 = vector.extract_strided_slice %80 {offsets = [0, 24], sizes = [8, 8], strides = [1, 1]} : vector<8x32xf32> to vector<8x8xf32>
    %162 = arith.truncf %161 : vector<8x8xf32> to vector<8x8xbf16>
    %163 = vector.extract_strided_slice %82 {offsets = [0, 24], sizes = [8, 8], strides = [1, 1]} : vector<8x32xf32> to vector<8x8xf32>
    %164 = arith.truncf %163 : vector<8x8xf32> to vector<8x8xbf16>
    %165 = vector.extract_strided_slice %84 {offsets = [0, 24], sizes = [8, 8], strides = [1, 1]} : vector<8x32xf32> to vector<8x8xf32>
    %166 = arith.truncf %165 : vector<8x8xf32> to vector<8x8xbf16>
    %cst_65 = arith.constant dense<0.000000e+00> : vector<8x8xf32>
    %167 = tpu.matmul %162, %164, %cst_65 {dimension_numbers = #tpu.dot_dimension_numbers<[1], [1], [0], [0], [0, 0, 1, 0], [], []>} : vector<8x8xbf16>, vector<8x8xbf16>, vector<8x8xf32> -> vector<8x8xf32>
    %cst_66 = arith.constant 0.353553385 : f32
    %168 = vector.broadcast %cst_66 : f32 to vector<8x8xf32>
    %169 = arith.mulf %167, %168 : vector<8x8xf32>
    %cst_67 = arith.constant dense<0xFF800000> : vector<8xf32>
    %170 = vector.multi_reduction <maximumf>, %169, %cst_67 [1] : vector<8x8xf32> to vector<8xf32>
    %171 = vector.shape_cast %170 : vector<8xf32> to vector<8x1xf32>
    %172 = vector.broadcast %171 : vector<8x1xf32> to vector<8x8xf32>
    %173 = arith.subf %169, %172 : vector<8x8xf32>
    %174 = math.exp %173 : vector<8x8xf32>
    %cst_68 = arith.constant dense<0.000000e+00> : vector<8xf32>
    %175 = vector.multi_reduction <add>, %174, %cst_68 [1] : vector<8x8xf32> to vector<8xf32>
    %176 = vector.shape_cast %175 : vector<8xf32> to vector<8x1xf32>
    %177 = tpu.reciprocal %176 {approx = true} : vector<8x1xf32> -> vector<8x1xf32>
    %178 = vector.broadcast %177 : vector<8x1xf32> to vector<8x8xf32>
    %179 = arith.mulf %174, %178 : vector<8x8xf32>
    %180 = arith.truncf %179 : vector<8x8xf32> to vector<8x8xbf16>
    %cst_69 = arith.constant dense<0.000000e+00> : vector<8x8xf32>
    %181 = tpu.matmul %180, %166, %cst_69 {dimension_numbers = #tpu.dot_dimension_numbers<[1], [0], [0], [1], [0, 0, 1, 1], [], []>} : vector<8x8xbf16>, vector<8x8xbf16>, vector<8x8xf32> -> vector<8x8xf32>
    %182 = arith.truncf %181 : vector<8x8xf32> to vector<8x8xbf16>
    %c24 = arith.constant 24 : index
    %c0_70 = arith.constant 0 : index
    %183 = vector.load %arg16[%c24, %c0_70] : memref<32x32xbf16, #tpu.memory_space<vmem>>, vector<8x32xbf16>
    %cst_71 = arith.constant dense<0.000000e+00> : vector<8x32xf32>
    %184 = tpu.matmul %182, %183, %cst_71 {dimension_numbers = #tpu.dot_dimension_numbers<[1], [0], [0], [1], [0, 0, 1, 1], [], []>} : vector<8x8xbf16>, vector<8x32xbf16>, vector<8x32xf32> -> vector<8x32xf32>
    %185 = arith.addf %160, %184 : vector<8x32xf32>
    %186 = arith.addf %9, %185 : vector<8x32xf32>
    %cst_72 = arith.constant dense<0.000000e+00> : vector<8xf32>
    %187 = vector.multi_reduction <add>, %186, %cst_72 [1] : vector<8x32xf32> to vector<8xf32>
    %188 = vector.shape_cast %187 : vector<8xf32> to vector<8x1xf32>
    %cst_73 = arith.constant 3.200000e+01 : f32
    %189 = vector.broadcast %cst_73 : f32 to vector<8x1xf32>
    %190 = arith.divf %188, %189 : vector<8x1xf32>
    %191 = vector.broadcast %190 : vector<8x1xf32> to vector<8x32xf32>
    %192 = arith.subf %186, %191 : vector<8x32xf32>
    %193 = arith.mulf %192, %192 : vector<8x32xf32>
    %cst_74 = arith.constant dense<0.000000e+00> : vector<8xf32>
    %194 = vector.multi_reduction <add>, %193, %cst_74 [1] : vector<8x32xf32> to vector<8xf32>
    %195 = vector.shape_cast %194 : vector<8xf32> to vector<8x1xf32>
    %cst_75 = arith.constant 3.100000e+01 : f32
    %196 = vector.broadcast %cst_75 : f32 to vector<8x1xf32>
    %197 = arith.divf %195, %196 : vector<8x1xf32>
    %c0_76 = arith.constant 0 : index
    %c0_77 = arith.constant 0 : index
    %198 = vector.load %arg11[%c0_76, %c0_77] : memref<1x32xf32, #tpu.memory_space<vmem>>, vector<1x32xf32>
    %199 = vector.broadcast %190 : vector<8x1xf32> to vector<8x32xf32>
    %200 = arith.subf %186, %199 : vector<8x32xf32>
    %201 = vector.broadcast %198 : vector<1x32xf32> to vector<8x32xf32>
    %202 = arith.mulf %201, %200 : vector<8x32xf32>
    %203 = math.sqrt %197 : vector<8x1xf32>
    %cst_78 = arith.constant 9.99999997E-7 : f32
    %204 = vector.broadcast %cst_78 : f32 to vector<8x1xf32>
    %205 = arith.addf %203, %204 : vector<8x1xf32>
    %206 = vector.broadcast %205 : vector<8x1xf32> to vector<8x32xf32>
    %207 = arith.divf %202, %206 : vector<8x32xf32>
    %c0_79 = arith.constant 0 : index
    %c0_80 = arith.constant 0 : index
    %208 = vector.load %arg12[%c0_79, %c0_80] : memref<1x32xf32, #tpu.memory_space<vmem>>, vector<1x32xf32>
    %209 = vector.broadcast %208 : vector<1x32xf32> to vector<8x32xf32>
    %210 = arith.addf %207, %209 : vector<8x32xf32>
    %211 = arith.truncf %210 : vector<8x32xf32> to vector<8x32xbf16>
    %c0_81 = arith.constant 0 : index
    %c0_82 = arith.constant 0 : index
    %212 = vector.load %arg17[%c0_81, %c0_82] : memref<32x64xbf16, #tpu.memory_space<vmem>>, vector<32x64xbf16>
    %cst_83 = arith.constant dense<0.000000e+00> : vector<8x64xf32>
    %213 = tpu.matmul %211, %212, %cst_83 {dimension_numbers = #tpu.dot_dimension_numbers<[1], [0], [0], [1], [0, 0, 1, 1], [], []>} : vector<8x32xbf16>, vector<32x64xbf16>, vector<8x64xf32> -> vector<8x64xf32>
    %c0_84 = arith.constant 0 : index
    %c0_85 = arith.constant 0 : index
    %214 = vector.load %arg18[%c0_84, %c0_85] : memref<1x64xf32, #tpu.memory_space<vmem>>, vector<1x64xf32>
    %215 = vector.broadcast %214 : vector<1x64xf32> to vector<8x64xf32>
    %216 = arith.addf %213, %215 : vector<8x64xf32>
    %cst_86 = arith.constant 0.000000e+00 : f32
    %217 = vector.broadcast %cst_86 : f32 to vector<8x64xf32>
    %218 = arith.maximumf %216, %217 : vector<8x64xf32>
    %219 = arith.truncf %218 : vector<8x64xf32> to vector<8x64xbf16>
    %c0_87 = arith.constant 0 : index
    %c0_88 = arith.constant 0 : index
    %220 = vector.load %arg19[%c0_87, %c0_88] : memref<64x32xbf16, #tpu.memory_space<vmem>>, vector<64x32xbf16>
    %cst_89 = arith.constant dense<0.000000e+00> : vector<8x32xf32>
    %221 = tpu.matmul %219, %220, %cst_89 {dimension_numbers = #tpu.dot_dimension_numbers<[1], [0], [0], [1], [0, 0, 1, 1], [], []>} : vector<8x64xbf16>, vector<64x32xbf16>, vector<8x32xf32> -> vector<8x32xf32>
    %222 = arith.addf %186, %221 : vector<8x32xf32>
    %c0_90 = arith.constant 0 : index
    %c0_91 = arith.constant 0 : index
    %223 = vector.load %arg20[%c0_90, %c0_91] : memref<1x32xf32, #tpu.memory_space<vmem>>, vector<1x32xf32>
    %224 = vector.broadcast %223 : vector<1x32xf32> to vector<8x32xf32>
    %225 = arith.addf %222, %224 : vector<8x32xf32>
    %226 = vector.broadcast %53 : vector<8x1xf32> to vector<8x32xf32>
    %227 = arith.mulf %225, %226 : vector<8x32xf32>
    %c0_92 = arith.constant 0 : index
    %c0_93 = arith.constant 0 : index
    %c0_94 = arith.constant 0 : index
    %228 = vector.load %arg21[%c0_92, %c0_93, %c0_94] : memref<1x8x32xf32, #tpu.memory_space<vmem>>, vector<1x8x32xf32>
    %229 = vector.shape_cast %228 : vector<1x8x32xf32> to vector<8x32xf32>
    %cst_95 = arith.constant 1.000000e+00 : f32
    %230 = vector.broadcast %cst_95 : f32 to vector<8x1xf32>
    %231 = arith.subf %230, %53 : vector<8x1xf32>
    %232 = vector.broadcast %231 : vector<8x1xf32> to vector<8x32xf32>
    %233 = arith.mulf %229, %232 : vector<8x32xf32>
    %234 = arith.addf %227, %233 : vector<8x32xf32>
    %c0_96 = arith.constant 0 : index
    %c0_97 = arith.constant 0 : index
    %c0_98 = arith.constant 0 : index
    %235 = vector.load %arg21[%c0_96, %c0_97, %c0_98] : memref<1x8x32xf32, #tpu.memory_space<vmem>>, vector<1x8x32xf32>
    %236 = vector.shape_cast %235 : vector<1x8x32xf32> to vector<8x32xf32>
    %237 = vector.shape_cast %234 : vector<8x32xf32> to vector<1x8x32xf32>
    tpu.vector_store %arg21[%c0_96, %c0_97, %c0_98], %237 {strides = array<i32>} : memref<1x8x32xf32, #tpu.memory_space<vmem>>, vector<1x8x32xf32>,
    %c0_99 = arith.constant 0 : index
    %c0_100 = arith.constant 0 : index
    %238 = vector.load %arg23[%c0_99, %c0_100] : memref<8x32xf32, #tpu.memory_space<vmem>>, vector<8x32xf32>
    tpu.vector_store %arg23[%c0_99, %c0_100], %225 {strides = array<i32>} : memref<8x32xf32, #tpu.memory_space<vmem>>, vector<8x32xf32>,
    %c0_101 = arith.constant 0 : index
    %c0_102 = arith.constant 0 : index
    %239 = vector.load %arg24[%c0_101, %c0_102] : memref<8x1xf32, #tpu.memory_space<vmem>>, vector<8x1xf32>
    tpu.vector_store %arg24[%c0_101, %c0_102], %47 {strides = array<i32>} : memref<8x1xf32, #tpu.memory_space<vmem>>, vector<8x1xf32>,
    %c0_103 = arith.constant 0 : index
    %c0_104 = arith.constant 0 : index
    %240 = vector.load %arg25[%c0_103, %c0_104] : memref<8x1xf32, #tpu.memory_space<vmem>>, vector<8x1xf32>
    tpu.vector_store %arg25[%c0_103, %c0_104], %45 {strides = array<i32>} : memref<8x1xf32, #tpu.memory_space<vmem>>, vector<8x1xf32>,
    %c0_105 = arith.constant 0 : index
    %c0_106 = arith.constant 0 : index
    %241 = vector.load %arg26[%c0_105, %c0_106] : memref<8x1xf32, #tpu.memory_space<vmem>>, vector<8x1xf32>
    tpu.vector_store %arg26[%c0_105, %c0_106], %50 {strides = array<i32>} : memref<8x1xf32, #tpu.memory_space<vmem>>, vector<8x1xf32>,
    %c2_i32 = arith.constant 2 : i32
    %242 = arith.cmpi eq, %arg1, %c2_i32 : i32
    %243 = arith.extui %242 : i1 to i32
    %c0_i32_107 = arith.constant 0 : i32
    %244 = arith.cmpi ne, %243, %c0_i32_107 : i32
    scf.if %244 {
      %c0_108 = arith.constant 0 : index
      %c0_109 = arith.constant 0 : index
      %c0_110 = arith.constant 0 : index
      %245 = vector.load %arg22[%c0_108, %c0_109, %c0_110] : memref<1x8x2xf32, #tpu.memory_space<vmem>>, vector<1x8x1xf32>
      %246 = vector.shape_cast %245 : vector<1x8x1xf32> to vector<8x1xf32>
      %247 = vector.shape_cast %45 : vector<8x1xf32> to vector<1x8x1xf32>
      tpu.vector_store %arg22[%c0_108, %c0_109, %c0_110], %247 {strides = array<i32>} : memref<1x8x2xf32, #tpu.memory_space<vmem>>, vector<1x8x1xf32>,
      %c0_111 = arith.constant 0 : index
      %c0_112 = arith.constant 0 : index
      %c1 = arith.constant 1 : index
      %248 = vector.load %arg22[%c0_111, %c0_112, %c1] : memref<1x8x2xf32, #tpu.memory_space<vmem>>, vector<1x8x1xf32>
      %249 = vector.shape_cast %248 : vector<1x8x1xf32> to vector<8x1xf32>
      %250 = vector.shape_cast %50 : vector<8x1xf32> to vector<1x8x1xf32>
      tpu.vector_store %arg22[%c0_111, %c0_112, %c1], %250 {strides = array<i32>} : memref<1x8x2xf32, #tpu.memory_space<vmem>>, vector<1x8x1xf32>,
    } else {
    }
    return
  }
  func.func @transform_0(%arg0: i32, %arg1: i32) -> (i32, i32, i32) {
    %c0_i32 = arith.constant 0 : i32
    %c0_i32_0 = arith.constant 0 : i32
    %c0_i32_1 = arith.constant 0 : i32
    return %arg0, %c0_i32, %c0_i32_0 : i32, i32, i32
  }
  func.func @transform_1(%arg0: i32, %arg1: i32) -> (i32, i32) {
    %c0_i32 = arith.constant 0 : i32
    %c0_i32_0 = arith.constant 0 : i32
    %c0_i32_1 = arith.constant 0 : i32
    return %c0_i32, %c0_i32_0 : i32, i32
  }
  func.func @transform_2(%arg0: i32, %arg1: i32) -> (i32, i32, i32) {
    %c0_i32 = arith.constant 0 : i32
    %c0_i32_0 = arith.constant 0 : i32
    %c0_i32_1 = arith.constant 0 : i32
    return %arg1, %c0_i32, %c0_i32_0 : i32, i32, i32
  }
  func.func @transform_3(%arg0: i32, %arg1: i32) -> (i32, i32) {
    %c0_i32 = arith.constant 0 : i32
    %c0_i32_0 = arith.constant 0 : i32
    %c0_i32_1 = arith.constant 0 : i32
    return %c0_i32, %c0_i32_0 : i32, i32
  }
  func.func @transform_4(%arg0: i32, %arg1: i32) -> (i32, i32) {
    %c0_i32 = arith.constant 0 : i32
    %c0_i32_0 = arith.constant 0 : i32
    %c0_i32_1 = arith.constant 0 : i32
    return %c0_i32, %c0_i32_0 : i32, i32
  }
  func.func @transform_5(%arg0: i32, %arg1: i32) -> (i32, i32) {
    %c0_i32 = arith.constant 0 : i32
    %c0_i32_0 = arith.constant 0 : i32
    %c0_i32_1 = arith.constant 0 : i32
    return %c0_i32, %c0_i32_0 : i32, i32
  }
  func.func @transform_6(%arg0: i32, %arg1: i32) -> (i32, i32) {
    %c0_i32 = arith.constant 0 : i32
    %c0_i32_0 = arith.constant 0 : i32
    %c0_i32_1 = arith.constant 0 : i32
    return %c0_i32, %c0_i32_0 : i32, i32
  }
  func.func @transform_7(%arg0: i32, %arg1: i32) -> (i32, i32) {
    %c0_i32 = arith.constant 0 : i32
    %c0_i32_0 = arith.constant 0 : i32
    %c0_i32_1 = arith.constant 0 : i32
    return %c0_i32, %c0_i32_0 : i32, i32
  }
  func.func @transform_8(%arg0: i32, %arg1: i32) -> (i32, i32) {
    %c0_i32 = arith.constant 0 : i32
    %c0_i32_0 = arith.constant 0 : i32
    %c0_i32_1 = arith.constant 0 : i32
    return %c0_i32, %c0_i32_0 : i32, i32
  }
  func.func @transform_9(%arg0: i32, %arg1: i32) -> (i32, i32) {
    %c0_i32 = arith.constant 0 : i32
    %c0_i32_0 = arith.constant 0 : i32
    %c0_i32_1 = arith.constant 0 : i32
    return %c0_i32, %c0_i32_0 : i32, i32
  }
  func.func @transform_10(%arg0: i32, %arg1: i32) -> (i32, i32) {
    %c0_i32 = arith.constant 0 : i32
    %c0_i32_0 = arith.constant 0 : i32
    %c0_i32_1 = arith.constant 0 : i32
    return %c0_i32, %c0_i32_0 : i32, i32
  }
  func.func @transform_11(%arg0: i32, %arg1: i32) -> (i32, i32) {
    %c0_i32 = arith.constant 0 : i32
    %c0_i32_0 = arith.constant 0 : i32
    %c0_i32_1 = arith.constant 0 : i32
    return %c0_i32, %c0_i32_0 : i32, i32
  }
  func.func @transform_12(%arg0: i32, %arg1: i32) -> (i32, i32) {
    %c0_i32 = arith.constant 0 : i32
    %c0_i32_0 = arith.constant 0 : i32
    %c0_i32_1 = arith.constant 0 : i32
    return %c0_i32, %c0_i32_0 : i32, i32
  }
  func.func @transform_13(%arg0: i32, %arg1: i32) -> (i32, i32) {
    %c0_i32 = arith.constant 0 : i32
    %c0_i32_0 = arith.constant 0 : i32
    %c0_i32_1 = arith.constant 0 : i32
    return %c0_i32, %c0_i32_0 : i32, i32
  }
  func.func @transform_14(%arg0: i32, %arg1: i32) -> (i32, i32) {
    %c0_i32 = arith.constant 0 : i32
    %c0_i32_0 = arith.constant 0 : i32
    %c0_i32_1 = arith.constant 0 : i32
    return %c0_i32, %c0_i32_0 : i32, i32
  }
  func.func @transform_15(%arg0: i32, %arg1: i32) -> (i32, i32) {
    %c0_i32 = arith.constant 0 : i32
    %c0_i32_0 = arith.constant 0 : i32
    %c0_i32_1 = arith.constant 0 : i32
    return %c0_i32, %c0_i32_0 : i32, i32
  }
  func.func @transform_16(%arg0: i32, %arg1: i32) -> (i32, i32) {
    %c0_i32 = arith.constant 0 : i32
    %c0_i32_0 = arith.constant 0 : i32
    %c0_i32_1 = arith.constant 0 : i32
    return %c0_i32, %c0_i32_0 : i32, i32
  }
  func.func @transform_17(%arg0: i32, %arg1: i32) -> (i32, i32) {
    %c0_i32 = arith.constant 0 : i32
    %c0_i32_0 = arith.constant 0 : i32
    %c0_i32_1 = arith.constant 0 : i32
    return %c0_i32, %c0_i32_0 : i32, i32
  }
  func.func @transform_18(%arg0: i32, %arg1: i32) -> (i32, i32) {
    %c0_i32 = arith.constant 0 : i32
    %c0_i32_0 = arith.constant 0 : i32
    %c0_i32_1 = arith.constant 0 : i32
    return %c0_i32, %c0_i32_0 : i32, i32
  }
  func.func @transform_19(%arg0: i32, %arg1: i32) -> (i32, i32, i32) {
    %c0_i32 = arith.constant 0 : i32
    %c0_i32_0 = arith.constant 0 : i32
    %c0_i32_1 = arith.constant 0 : i32
    return %arg0, %c0_i32, %c0_i32_0 : i32, i32, i32
  }
  func.func @transform_20(%arg0: i32, %arg1: i32) -> (i32, i32, i32) {
    %c0_i32 = arith.constant 0 : i32
    %c0_i32_0 = arith.constant 0 : i32
    %c0_i32_1 = arith.constant 0 : i32
    return %arg0, %c0_i32, %c0_i32_0 : i32, i32, i32
  }
}

</mosaic_0001>

<llo_original>
// kernel: tpu_custom_call.1
$region0: #{tpu_custom_call.1}
  #allocation0 [shape = 'u32[]', space=smem, size = 0x4, offset = 0x4, fixed_abs, tag = 'smem constant byte address 0x4 - core index']
  #allocation1 [shape = 'u32[144,128]{1,0:T(1,128)}', space=vmem, size = 0x12000, scoped, tag = 'internal scratch']
  #allocation2 [shape = 'f32[8,32]{1,0:T(8,128)}', space=vmem, size = 0x1000, scoped, tag = 'scratch operand']
  #allocation3 [shape = 'f32[8,1]{1,0:T(8,128)}', space=vmem, size = 0x1000, scoped, tag = 'scratch operand']
  #allocation4 [shape = 'f32[8,1]{1,0:T(8,128)}', space=vmem, size = 0x1000, scoped, tag = 'scratch operand']
  #allocation5 [shape = 'f32[8,1]{1,0:T(8,128)}', space=vmem, size = 0x1000, scoped, tag = 'scratch operand']
  #allocation6 [shape = 'f32[1,1]{1,0:T(1,128)S(1)}', space=vmem, size = 0x200, scoped, tag = 'scoped memory for tpu_custom_call.1']
  %s0 = inlined_call_operand.vmem [shape: f32[2,8,16], index: 0, kind: input, shape index: {}]
  %s1 = inlined_call_operand.hbm [shape: f32[8,32], index: 1, kind: input, shape index: {}]
  %s2 = inlined_call_operand.hbm [shape: f32[3,1,32], index: 2, kind: input, shape index: {}]
  %s3 = inlined_call_operand.hbm [shape: bf16[16,32], index: 3, kind: input, shape index: {}]
  %s4 = inlined_call_operand.vmem [shape: f32[1,32], index: 4, kind: input, shape index: {}]
  %s5 = inlined_call_operand.vmem [shape: f32[32,1], index: 5, kind: input, shape index: {}]
  %s6 = inlined_call_operand.<no memory space> [shape: f32[1,1], index: 6, kind: input, shape index: {}]
  %s7 = inlined_call_operand.vmem [shape: f32[1,32], index: 7, kind: input, shape index: {}]
  %s8 = inlined_call_operand.vmem [shape: f32[1,32], index: 8, kind: input, shape index: {}]
  %s9 = inlined_call_operand.hbm [shape: f32[1,32], index: 9, kind: input, shape index: {}]
  %s10 = inlined_call_operand.vmem [shape: f32[1,32], index: 10, kind: input, shape index: {}]
  %s11 = inlined_call_operand.vmem [shape: bf16[32,32], index: 11, kind: input, shape index: {}]
  %s12 = inlined_call_operand.vmem [shape: bf16[32,32], index: 12, kind: input, shape index: {}]
  %s13 = inlined_call_operand.vmem [shape: bf16[32,32], index: 13, kind: input, shape index: {}]
  %s14 = inlined_call_operand.vmem [shape: bf16[32,32], index: 14, kind: input, shape index: {}]
  %s15 = inlined_call_operand.vmem [shape: bf16[32,64], index: 15, kind: input, shape index: {}]
  %s16 = inlined_call_operand.vmem [shape: f32[1,64], index: 16, kind: input, shape index: {}]
  %s17 = inlined_call_operand.vmem [shape: bf16[64,32], index: 17, kind: input, shape index: {}]
  %s18 = inlined_call_operand.vmem [shape: f32[1,32], index: 18, kind: input, shape index: {}]
  %s19 = inlined_call_operand.hbm [shape: f32[2,8,32], index: 19, kind: output, shape index: {0}]
  %s20 = inlined_call_operand.vmem [shape: f32[2,8,2], index: 20, kind: output, shape index: {1}]
  %21 = xla_tuple %s19, %s20
  %s22 = sld [smem:[#allocation0]]
  $region141: #{tpu_custom_call.1} parent=0
    _
  %s24 = ssub.s32 1, %s22
  %s25 = scalar_select 0, %s24, %s22
  %v26 = vstv %s6
  %27 = vst [vmem:[#allocation6] sm:$0x1] %v26
  $region1: #{tpu_custom_call.1} parent=0
    #allocation7 [shape = 'u8[4096]{0}', space=vmem, size = 0x1000, scoped, tag = 'input window, operand 1, single buffered']
    #allocation8 [shape = 's32[2]{0}', space=sflag, size = 0x8, scoped, tag = 'scoped memory for tpu_custom_call.1']
    #allocation9 [shape = 's32[2]{0}', space=sflag, size = 0x8, scoped, tag = 'scoped memory for tpu_custom_call.1']
    #allocation10 [shape = 'u8[1024]{0}', space=vmem, size = 0x400, scoped, tag = 'input window, operand 2']
    #allocation11 [shape = 's32[2]{0}', space=sflag, size = 0x8, scoped, tag = 'scoped memory for tpu_custom_call.1']
    #allocation12 [shape = 'u8[4096]{0}', space=vmem, size = 0x1000, scoped, tag = 'input window, operand 3, single buffered']
    #allocation13 [shape = 'u8[512]{0}', space=vmem, size = 0x400, scoped, tag = 'input window, operand 9, single buffered']
    #allocation14 [shape = 's32[1]{0}', space=sflag, size = 0x4, scoped, tag = 'scoped memory for tpu_custom_call.1']
    #allocation15 [shape = 'u8[8192]{0}', space=vmem, size = 0x2000, scoped, tag = 'output window, operand 0']
    %28 = vsyncpa [#allocation8], 0
    %29 = vsyncpa [#allocation11], 0
    %s30 = scalar_lea.sflag [#allocation11], 1
    %31 = vsyncpa %s30, 0
    %32 = vsyncpa [#allocation14], 0
    %33 = vsyncpa [#allocation9], 0
    %s34 = scalar_lea.sflag [#allocation9], 1
    %35 = vsyncpa %s34, 0
    loop: start=0, step=1, limit=8
    $region2: #{tpu_custom_call.1} parent=1 // loop_pre_header
      _
    $region3: #{tpu_custom_call.1} parent=1 // loop_header
      %s37 = sphi 0, %s41
      %p38 = scmp.ge.s32.totalorder %s37, 8
      %s44 = sphi 0, %s56
      %s45 = sphi 0, %s52
      %s46 = sphi 0, %s44
      %s47 = sphi 0, %s45
      %s48 = sphi 0, %s46
      %s49 = sphi 0, %s47
      %s59 = sphi 0, %s61
      %s62 = sphi 0, %s59
      %s63 = sphi 0, %s62
      %s79 = sphi 0, %s63
      %s83 = sphi 0, %s83
      %s85 = sphi 0, %s83
      %s86 = sphi 0, %s85
      %s100 = sphi 0, %s86
      %s106 = sphi 0, %s108
      %s109 = sphi 0, %s106
      %s110 = sphi 0, %s109
      %s126 = sphi 0, %s110
      %s130 = sphi 0, %s130
      %s132 = sphi 0, %s130
      %s133 = sphi 0, %s132
      %s147 = sphi 0, %s133
      %s151 = sphi 0, %s151
      %s153 = sphi 0, %s151
      %s154 = sphi 0, %s153
      %s168 = sphi 0, %s154
      %s172 = sphi 0, %s172
      %s174 = sphi 0, %s172
      %s175 = sphi 0, %s174
      %s189 = sphi 0, %s175
      %s193 = sphi 0, %s193
      %s195 = sphi 0, %s193
      %s196 = sphi 0, %s195
      %s210 = sphi 0, %s196
      %s214 = sphi 0, %s214
      %s216 = sphi 0, %s214
      %s217 = sphi 0, %s216
      %s231 = sphi 0, %s217
      %s235 = sphi 0, %s235
      %s237 = sphi 0, %s235
      %s238 = sphi 0, %s237
      %s252 = sphi 0, %s238
      %s256 = sphi 0, %s256
      %s258 = sphi 0, %s256
      %s259 = sphi 0, %s258
      %s273 = sphi 0, %s259
      %s277 = sphi 0, %s277
      %s279 = sphi 0, %s277
      %s280 = sphi 0, %s279
      %s294 = sphi 0, %s280
      %s298 = sphi 0, %s298
      %s300 = sphi 0, %s298
      %s301 = sphi 0, %s300
      %s315 = sphi 0, %s301
      %s319 = sphi 0, %s319
      %s321 = sphi 0, %s319
      %s322 = sphi 0, %s321
      %s336 = sphi 0, %s322
      %s340 = sphi 0, %s340
      %s342 = sphi 0, %s340
      %s343 = sphi 0, %s342
      %s357 = sphi 0, %s343
      %s361 = sphi 0, %s361
      %s363 = sphi 0, %s361
      %s364 = sphi 0, %s363
      %s378 = sphi 0, %s364
      %s382 = sphi 0, %s382
      %s384 = sphi 0, %s382
      %s385 = sphi 0, %s384
      %s399 = sphi 0, %s385
      %s403 = sphi 0, %s403
      %s405 = sphi 0, %s403
      %s406 = sphi 0, %s405
      %s420 = sphi 0, %s406
      %s424 = sphi 0, %s424
      %s426 = sphi 0, %s424
      %s427 = sphi 0, %s426
      %s441 = sphi 0, %s427
      %s445 = sphi 0, %s445
      %s447 = sphi 0, %s445
      %s448 = sphi 0, %s447
      %s462 = sphi 0, %s448
      %s468 = sphi 0, %s470
      %s471 = sphi 0, %s468
      %s472 = sphi 0, %s471
      %s488 = sphi 0, %s472
      %s494 = sphi 0, %s496
      %s497 = sphi 0, %s494
      %s498 = sphi 0, %s497
      %s514 = sphi 0, %s498
    $region4: #{tpu_custom_call.1} parent=1 // loop_header_branch
      %40 = sbr.rel (%p38) target = $region8
    $region5: #{tpu_custom_call.1} parent=1 // loop_body
      %s42 = ssub.s32 %s37, 1
      %s43 = ssub.s32 %s37, 2
      %s50 = sadd.s32 1, %s45
      %p51 = scmp.ge.s32.totalorder %s50, 3
      %s52 = scalar_select %p51, 0, %s50
      %s53 = sadd.s32 1, %s44
      %s54 = scalar_select %p51, %s53, %s44
      %p55 = scmp.ge.s32.totalorder %s54, 2
      %s56 = scalar_select %p55, 0, %s54
      %s57 = ssub.s32 %s44, %s56
      %p58 = scmp.eq.s32.totalorder %s57, 0
      %s60 = sadd.s32 %s59, 1
      %s61 = scalar_select %p58, %s59, %s60
      %p64 = pneg %p58
      %p65 = scmp.eq.s32.totalorder %s37, 5
      %p66 = por %p64, %p65
      %p67 = scmp.ne.s32.totalorder %s59, %s62
      %p68 = scmp.eq.s32.totalorder %s37, 0
      %p69 = por %p67, %p68
      %p70 = scmp.ne.s32.totalorder %s59, %s62
      %p71 = scmp.eq.s32.totalorder %s42, 5
      %p72 = por %p70, %p71
      %p73 = scmp.ne.s32.totalorder %s62, %s63
      %p74 = scmp.eq.s32.totalorder %s42, 0
      %p75 = por %p73, %p74
      %p76 = scmp.ne.s32.totalorder %s62, %s63
      %p77 = scmp.eq.s32.totalorder %s43, 5
      %p78 = por %p76, %p77
      %p80 = scmp.ne.s32.totalorder %s63, %s79
      %p81 = scmp.eq.s32.totalorder %s43, 0
      %p82 = por %p80, %p81
      %s84 = sadd.s32 %s83, 1
      %p87 = scmp.eq.s32.totalorder %s37, 5
      %p88 = scmp.ne.s32.totalorder %s83, %s85
      %p89 = scmp.eq.s32.totalorder %s37, 0
      %p90 = por %p88, %p89
      %p91 = scmp.ne.s32.totalorder %s83, %s85
      %p92 = scmp.eq.s32.totalorder %s42, 5
      %p93 = por %p91, %p92
      %p94 = scmp.ne.s32.totalorder %s85, %s86
      %p95 = scmp.eq.s32.totalorder %s42, 0
      %p96 = por %p94, %p95
      %p97 = scmp.ne.s32.totalorder %s85, %s86
      %p98 = scmp.eq.s32.totalorder %s43, 5
      %p99 = por %p97, %p98
      %p101 = scmp.ne.s32.totalorder %s86, %s100
      %p102 = scmp.eq.s32.totalorder %s43, 0
      %p103 = por %p101, %p102
      %s104 = ssub.s32 %s45, %s52
      %p105 = scmp.eq.s32.totalorder %s104, 0
      %s107 = sadd.s32 %s106, 1
      %s108 = scalar_select %p105, %s106, %s107
      %p111 = pneg %p105
      %p112 = scmp.eq.s32.totalorder %s37, 5
      %p113 = por %p111, %p112
      %p114 = scmp.ne.s32.totalorder %s106, %s109
      %p115 = scmp.eq.s32.totalorder %s37, 0
      %p116 = por %p114, %p115
      %p117 = scmp.ne.s32.totalorder %s106, %s109
      %p118 = scmp.eq.s32.totalorder %s42, 5
      %p119 = por %p117, %p118
      %p120 = scmp.ne.s32.totalorder %s109, %s110
      %p121 = scmp.eq.s32.totalorder %s42, 0
      %p122 = por %p120, %p121
      %p123 = scmp.ne.s32.totalorder %s109, %s110
      %p124 = scmp.eq.s32.totalorder %s43, 5
      %p125 = por %p123, %p124
      %p127 = scmp.ne.s32.totalorder %s110, %s126
      %p128 = scmp.eq.s32.totalorder %s43, 0
      %p129 = por %p127, %p128
      %s131 = sadd.s32 %s130, 1
      %p134 = scmp.eq.s32.totalorder %s37, 5
      %p135 = scmp.ne.s32.totalorder %s130, %s132
      %p136 = scmp.eq.s32.totalorder %s37, 0
      %p137 = por %p135, %p136
      %p138 = scmp.ne.s32.totalorder %s130, %s132
      %p139 = scmp.eq.s32.totalorder %s42, 5
      %p140 = por %p138, %p139
      %p141 = scmp.ne.s32.totalorder %s132, %s133
      %p142 = scmp.eq.s32.totalorder %s42, 0
      %p143 = por %p141, %p142
      %p144 = scmp.ne.s32.totalorder %s132, %s133
      %p145 = scmp.eq.s32.totalorder %s43, 5
      %p146 = por %p144, %p145
      %p148 = scmp.ne.s32.totalorder %s133, %s147
      %p149 = scmp.eq.s32.totalorder %s43, 0
      %p150 = por %p148, %p149
      %s152 = sadd.s32 %s151, 1
      %p155 = scmp.eq.s32.totalorder %s37, 5
      %p156 = scmp.ne.s32.totalorder %s151, %s153
      %p157 = scmp.eq.s32.totalorder %s37, 0
      %p158 = por %p156, %p157
      %p159 = scmp.ne.s32.totalorder %s151, %s153
      %p160 = scmp.eq.s32.totalorder %s42, 5
      %p161 = por %p159, %p160
      %p162 = scmp.ne.s32.totalorder %s153, %s154
      %p163 = scmp.eq.s32.totalorder %s42, 0
      %p164 = por %p162, %p163
      %p165 = scmp.ne.s32.totalorder %s153, %s154
      %p166 = scmp.eq.s32.totalorder %s43, 5
      %p167 = por %p165, %p166
      %p169 = scmp.ne.s32.totalorder %s154, %s168
      %p170 = scmp.eq.s32.totalorder %s43, 0
      %p171 = por %p169, %p170
      %s173 = sadd.s32 %s172, 1
      %p176 = scmp.eq.s32.totalorder %s37, 5
      %p177 = scmp.ne.s32.totalorder %s172, %s174
      %p178 = scmp.eq.s32.totalorder %s37, 0
      %p179 = por %p177, %p178
      %p180 = scmp.ne.s32.totalorder %s172, %s174
      %p181 = scmp.eq.s32.totalorder %s42, 5
      %p182 = por %p180, %p181
      %p183 = scmp.ne.s32.totalorder %s174, %s175
      %p184 = scmp.eq.s32.totalorder %s42, 0
      %p185 = por %p183, %p184
      %p186 = scmp.ne.s32.totalorder %s174, %s175
      %p187 = scmp.eq.s32.totalorder %s43, 5
      %p188 = por %p186, %p187
      %p190 = scmp.ne.s32.totalorder %s175, %s189
      %p191 = scmp.eq.s32.totalorder %s43, 0
      %p192 = por %p190, %p191
      %s194 = sadd.s32 %s193, 1
      %p197 = scmp.eq.s32.totalorder %s37, 5
      %p198 = scmp.ne.s32.totalorder %s193, %s195
      %p199 = scmp.eq.s32.totalorder %s37, 0
      %p200 = por %p198, %p199
      %p201 = scmp.ne.s32.totalorder %s193, %s195
      %p202 = scmp.eq.s32.totalorder %s42, 5
      %p203 = por %p201, %p202
      %p204 = scmp.ne.s32.totalorder %s195, %s196
      %p205 = scmp.eq.s32.totalorder %s42, 0
      %p206 = por %p204, %p205
      %p207 = scmp.ne.s32.totalorder %s195, %s196
      %p208 = scmp.eq.s32.totalorder %s43, 5
      %p209 = por %p207, %p208
      %p211 = scmp.ne.s32.totalorder %s196, %s210
      %p212 = scmp.eq.s32.totalorder %s43, 0
      %p213 = por %p211, %p212
      %s215 = sadd.s32 %s214, 1
      %p218 = scmp.eq.s32.totalorder %s37, 5
      %p219 = scmp.ne.s32.totalorder %s214, %s216
      %p220 = scmp.eq.s32.totalorder %s37, 0
      %p221 = por %p219, %p220
      %p222 = scmp.ne.s32.totalorder %s214, %s216
      %p223 = scmp.eq.s32.totalorder %s42, 5
      %p224 = por %p222, %p223
      %p225 = scmp.ne.s32.totalorder %s216, %s217
      %p226 = scmp.eq.s32.totalorder %s42, 0
      %p227 = por %p225, %p226
      %p228 = scmp.ne.s32.totalorder %s216, %s217
      %p229 = scmp.eq.s32.totalorder %s43, 5
      %p230 = por %p228, %p229
      %p232 = scmp.ne.s32.totalorder %s217, %s231
      %p233 = scmp.eq.s32.totalorder %s43, 0
      %p234 = por %p232, %p233
      %s236 = sadd.s32 %s235, 1
      %p239 = scmp.eq.s32.totalorder %s37, 5
      %p240 = scmp.ne.s32.totalorder %s235, %s237
      %p241 = scmp.eq.s32.totalorder %s37, 0
      %p242 = por %p240, %p241
      %p243 = scmp.ne.s32.totalorder %s235, %s237
      %p244 = scmp.eq.s32.totalorder %s42, 5
      %p245 = por %p243, %p244
      %p246 = scmp.ne.s32.totalorder %s237, %s238
      %p247 = scmp.eq.s32.totalorder %s42, 0
      %p248 = por %p246, %p247
      %p249 = scmp.ne.s32.totalorder %s237, %s238
      %p250 = scmp.eq.s32.totalorder %s43, 5
      %p251 = por %p249, %p250
      %p253 = scmp.ne.s32.totalorder %s238, %s252
      %p254 = scmp.eq.s32.totalorder %s43, 0
      %p255 = por %p253, %p254
      %s257 = sadd.s32 %s256, 1
      %p260 = scmp.eq.s32.totalorder %s37, 5
      %p261 = scmp.ne.s32.totalorder %s256, %s258
      %p262 = scmp.eq.s32.totalorder %s37, 0
      %p263 = por %p261, %p262
      %p264 = scmp.ne.s32.totalorder %s256, %s258
      %p265 = scmp.eq.s32.totalorder %s42, 5
      %p266 = por %p264, %p265
      %p267 = scmp.ne.s32.totalorder %s258, %s259
      %p268 = scmp.eq.s32.totalorder %s42, 0
      %p269 = por %p267, %p268
      %p270 = scmp.ne.s32.totalorder %s258, %s259
      %p271 = scmp.eq.s32.totalorder %s43, 5
      %p272 = por %p270, %p271
      %p274 = scmp.ne.s32.totalorder %s259, %s273
      %p275 = scmp.eq.s32.totalorder %s43, 0
      %p276 = por %p274, %p275
      %s278 = sadd.s32 %s277, 1
      %p281 = scmp.eq.s32.totalorder %s37, 5
      %p282 = scmp.ne.s32.totalorder %s277, %s279
      %p283 = scmp.eq.s32.totalorder %s37, 0
      %p284 = por %p282, %p283
      %p285 = scmp.ne.s32.totalorder %s277, %s279
      %p286 = scmp.eq.s32.totalorder %s42, 5
      %p287 = por %p285, %p286
      %p288 = scmp.ne.s32.totalorder %s279, %s280
      %p289 = scmp.eq.s32.totalorder %s42, 0
      %p290 = por %p288, %p289
      %p291 = scmp.ne.s32.totalorder %s279, %s280
      %p292 = scmp.eq.s32.totalorder %s43, 5
      %p293 = por %p291, %p292
      %p295 = scmp.ne.s32.totalorder %s280, %s294
      %p296 = scmp.eq.s32.totalorder %s43, 0
      %p297 = por %p295, %p296
      %s299 = sadd.s32 %s298, 1
      %p302 = scmp.eq.s32.totalorder %s37, 5
      %p303 = scmp.ne.s32.totalorder %s298, %s300
      %p304 = scmp.eq.s32.totalorder %s37, 0
      %p305 = por %p303, %p304
      %p306 = scmp.ne.s32.totalorder %s298, %s300
      %p307 = scmp.eq.s32.totalorder %s42, 5
      %p308 = por %p306, %p307
      %p309 = scmp.ne.s32.totalorder %s300, %s301
      %p310 = scmp.eq.s32.totalorder %s42, 0
      %p311 = por %p309, %p310
      %p312 = scmp.ne.s32.totalorder %s300, %s301
      %p313 = scmp.eq.s32.totalorder %s43, 5
      %p314 = por %p312, %p313
      %p316 = scmp.ne.s32.totalorder %s301, %s315
      %p317 = scmp.eq.s32.totalorder %s43, 0
      %p318 = por %p316, %p317
      %s320 = sadd.s32 %s319, 1
      %p323 = scmp.eq.s32.totalorder %s37, 5
      %p324 = scmp.ne.s32.totalorder %s319, %s321
      %p325 = scmp.eq.s32.totalorder %s37, 0
      %p326 = por %p324, %p325
      %p327 = scmp.ne.s32.totalorder %s319, %s321
      %p328 = scmp.eq.s32.totalorder %s42, 5
      %p329 = por %p327, %p328
      %p330 = scmp.ne.s32.totalorder %s321, %s322
      %p331 = scmp.eq.s32.totalorder %s42, 0
      %p332 = por %p330, %p331
      %p333 = scmp.ne.s32.totalorder %s321, %s322
      %p334 = scmp.eq.s32.totalorder %s43, 5
      %p335 = por %p333, %p334
      %p337 = scmp.ne.s32.totalorder %s322, %s336
      %p338 = scmp.eq.s32.totalorder %s43, 0
      %p339 = por %p337, %p338
      %s341 = sadd.s32 %s340, 1
      %p344 = scmp.eq.s32.totalorder %s37, 5
      %p345 = scmp.ne.s32.totalorder %s340, %s342
      %p346 = scmp.eq.s32.totalorder %s37, 0
      %p347 = por %p345, %p346
      %p348 = scmp.ne.s32.totalorder %s340, %s342
      %p349 = scmp.eq.s32.totalorder %s42, 5
      %p350 = por %p348, %p349
      %p351 = scmp.ne.s32.totalorder %s342, %s343
      %p352 = scmp.eq.s32.totalorder %s42, 0
      %p353 = por %p351, %p352
      %p354 = scmp.ne.s32.totalorder %s342, %s343
      %p355 = scmp.eq.s32.totalorder %s43, 5
      %p356 = por %p354, %p355
      %p358 = scmp.ne.s32.totalorder %s343, %s357
      %p359 = scmp.eq.s32.totalorder %s43, 0
      %p360 = por %p358, %p359
      %s362 = sadd.s32 %s361, 1
      %p365 = scmp.eq.s32.totalorder %s37, 5
      %p366 = scmp.ne.s32.totalorder %s361, %s363
      %p367 = scmp.eq.s32.totalorder %s37, 0
      %p368 = por %p366, %p367
      %p369 = scmp.ne.s32.totalorder %s361, %s363
      %p370 = scmp.eq.s32.totalorder %s42, 5
      %p371 = por %p369, %p370
      %p372 = scmp.ne.s32.totalorder %s363, %s364
      %p373 = scmp.eq.s32.totalorder %s42, 0
      %p374 = por %p372, %p373
      %p375 = scmp.ne.s32.totalorder %s363, %s364
      %p376 = scmp.eq.s32.totalorder %s43, 5
      %p377 = por %p375, %p376
      %p379 = scmp.ne.s32.totalorder %s364, %s378
      %p380 = scmp.eq.s32.totalorder %s43, 0
      %p381 = por %p379, %p380
      %s383 = sadd.s32 %s382, 1
      %p386 = scmp.eq.s32.totalorder %s37, 5
      %p387 = scmp.ne.s32.totalorder %s382, %s384
      %p388 = scmp.eq.s32.totalorder %s37, 0
      %p389 = por %p387, %p388
      %p390 = scmp.ne.s32.totalorder %s382, %s384
      %p391 = scmp.eq.s32.totalorder %s42, 5
      %p392 = por %p390, %p391
      %p393 = scmp.ne.s32.totalorder %s384, %s385
      %p394 = scmp.eq.s32.totalorder %s42, 0
      %p395 = por %p393, %p394
      %p396 = scmp.ne.s32.totalorder %s384, %s385
      %p397 = scmp.eq.s32.totalorder %s43, 5
      %p398 = por %p396, %p397
      %p400 = scmp.ne.s32.totalorder %s385, %s399
      %p401 = scmp.eq.s32.totalorder %s43, 0
      %p402 = por %p400, %p401
      %s404 = sadd.s32 %s403, 1
      %p407 = scmp.eq.s32.totalorder %s37, 5
      %p408 = scmp.ne.s32.totalorder %s403, %s405
      %p409 = scmp.eq.s32.totalorder %s37, 0
      %p410 = por %p408, %p409
      %p411 = scmp.ne.s32.totalorder %s403, %s405
      %p412 = scmp.eq.s32.totalorder %s42, 5
      %p413 = por %p411, %p412
      %p414 = scmp.ne.s32.totalorder %s405, %s406
      %p415 = scmp.eq.s32.totalorder %s42, 0
      %p416 = por %p414, %p415
      %p417 = scmp.ne.s32.totalorder %s405, %s406
      %p418 = scmp.eq.s32.totalorder %s43, 5
      %p419 = por %p417, %p418
      %p421 = scmp.ne.s32.totalorder %s406, %s420
      %p422 = scmp.eq.s32.totalorder %s43, 0
      %p423 = por %p421, %p422
      %s425 = sadd.s32 %s424, 1
      %p428 = scmp.eq.s32.totalorder %s37, 5
      %p429 = scmp.ne.s32.totalorder %s424, %s426
      %p430 = scmp.eq.s32.totalorder %s37, 0
      %p431 = por %p429, %p430
      %p432 = scmp.ne.s32.totalorder %s424, %s426
      %p433 = scmp.eq.s32.totalorder %s42, 5
      %p434 = por %p432, %p433
      %p435 = scmp.ne.s32.totalorder %s426, %s427
      %p436 = scmp.eq.s32.totalorder %s42, 0
      %p437 = por %p435, %p436
      %p438 = scmp.ne.s32.totalorder %s426, %s427
      %p439 = scmp.eq.s32.totalorder %s43, 5
      %p440 = por %p438, %p439
      %p442 = scmp.ne.s32.totalorder %s427, %s441
      %p443 = scmp.eq.s32.totalorder %s43, 0
      %p444 = por %p442, %p443
      %s446 = sadd.s32 %s445, 1
      %p449 = scmp.eq.s32.totalorder %s37, 5
      %p450 = scmp.ne.s32.totalorder %s445, %s447
      %p451 = scmp.eq.s32.totalorder %s37, 0
      %p452 = por %p450, %p451
      %p453 = scmp.ne.s32.totalorder %s445, %s447
      %p454 = scmp.eq.s32.totalorder %s42, 5
      %p455 = por %p453, %p454
      %p456 = scmp.ne.s32.totalorder %s447, %s448
      %p457 = scmp.eq.s32.totalorder %s42, 0
      %p458 = por %p456, %p457
      %p459 = scmp.ne.s32.totalorder %s447, %s448
      %p460 = scmp.eq.s32.totalorder %s43, 5
      %p461 = por %p459, %p460
      %p463 = scmp.ne.s32.totalorder %s448, %s462
      %p464 = scmp.eq.s32.totalorder %s43, 0
      %p465 = por %p463, %p464
      %s466 = ssub.s32 %s44, %s56
      %p467 = scmp.eq.s32.totalorder %s466, 0
      %s469 = sadd.s32 %s468, 1
      %s470 = scalar_select %p467, %s468, %s469
      %p473 = pneg %p467
      %p474 = scmp.eq.s32.totalorder %s37, 5
      %p475 = por %p473, %p474
      %p476 = scmp.ne.s32.totalorder %s468, %s471
      %p477 = scmp.eq.s32.totalorder %s37, 0
      %p478 = por %p476, %p477
      %p479 = scmp.ne.s32.totalorder %s468, %s471
      %p480 = scmp.eq.s32.totalorder %s42, 5
      %p481 = por %p479, %p480
      %p482 = scmp.ne.s32.totalorder %s471, %s472
      %p483 = scmp.eq.s32.totalorder %s42, 0
      %p484 = por %p482, %p483
      %p485 = scmp.ne.s32.totalorder %s471, %s472
      %p486 = scmp.eq.s32.totalorder %s43, 5
      %p487 = por %p485, %p486
      %p489 = scmp.ne.s32.totalorder %s472, %s488
      %p490 = scmp.eq.s32.totalorder %s43, 0
      %p491 = por %p489, %p490
      %s492 = ssub.s32 %s44, %s56
      %p493 = scmp.eq.s32.totalorder %s492, 0
      %s495 = sadd.s32 %s494, 1
      %s496 = scalar_select %p493, %s494, %s495
      %p499 = pneg %p493
      %p500 = scmp.eq.s32.totalorder %s37, 5
      %p501 = por %p499, %p500
      %p502 = scmp.ne.s32.totalorder %s494, %s497
      %p503 = scmp.eq.s32.totalorder %s37, 0
      %p504 = por %p502, %p503
      %p505 = scmp.ne.s32.totalorder %s494, %s497
      %p506 = scmp.eq.s32.totalorder %s42, 5
      %p507 = por %p505, %p506
      %p508 = scmp.ne.s32.totalorder %s497, %s498
      %p509 = scmp.eq.s32.totalorder %s42, 0
      %p510 = por %p508, %p509
      %p511 = scmp.ne.s32.totalorder %s497, %s498
      %p512 = scmp.eq.s32.totalorder %s43, 5
      %p513 = por %p511, %p512
      %p515 = scmp.ne.s32.totalorder %s498, %s514
      %p516 = scmp.eq.s32.totalorder %s43, 0
      %p517 = por %p515, %p516
      %p518 = scmp.le.s32.totalorder 1, %s37
      %p519 = scmp.lt.s32.totalorder %s37, 7
      %p520 = pnand %p518, %p519
      %p521 = pneg %p520
      // Predicated region
      $region9: #{tpu_custom_call.1} parent=5 // pred_check
        _
      $region10: #{tpu_custom_call.1} parent=5 // pred_check_branch
        %523 = sbr.rel (%p520) target = $region12
      $region11: #{tpu_custom_call.1} parent=5 // pred_region
        %s524 = ssub.s32 %s37, 1
        // Predicated region
        $region13: #{tpu_custom_call.1} parent=11 // pred_check
          %p525 = pneg %p96
        $region14: #{tpu_custom_call.1} parent=11 // pred_check_branch
          %527 = sbr.rel (%p525) target = $region16
        $region15: #{tpu_custom_call.1} parent=11 // pred_region
          %s529 = ssub.s32 128, 128
          %530 = vsyncadd [#allocation8], %s529
          %s532 = sshll.u32 [#allocation7], 4
          %s533 = int_to_ptr.vmem [resolvable:$true] %s532
          %535 = dma.hbm_to_vmem [thread:$0]  %s1, 128, %s533, [#allocation8]
        $region16: #{tpu_custom_call.1} parent=11 // pred_fallthru
          _
        // Predicated region
        $region17: #{tpu_custom_call.1} parent=11 // pred_check
          %p536 = pneg %p143
        $region18: #{tpu_custom_call.1} parent=11 // pred_check_branch
          %538 = sbr.rel (%p536) target = $region20
        $region19: #{tpu_custom_call.1} parent=11 // pred_region
          %s540 = ssub.s32 128, 128
          %541 = vsyncadd [#allocation11], %s540
          %s542 = sshll.u32 [#allocation12], 4
          %s543 = int_to_ptr.vmem [resolvable:$true] %s542
          %548 = dma.hbm_to_vmem [thread:$0]  %s3, 128, %s543, [#allocation11], 64, 64, 4
        $region20: #{tpu_custom_call.1} parent=11 // pred_fallthru
          _
        // Predicated region
        $region21: #{tpu_custom_call.1} parent=11 // pred_check
          %p549 = pneg %p164
        $region22: #{tpu_custom_call.1} parent=11 // pred_check_branch
          %551 = sbr.rel (%p549) target = $region24
        $region23: #{tpu_custom_call.1} parent=11 // pred_region
          _
        $region24: #{tpu_custom_call.1} parent=11 // pred_fallthru
          _
        // Predicated region
        $region25: #{tpu_custom_call.1} parent=11 // pred_check
          %p552 = pneg %p185
        $region26: #{tpu_custom_call.1} parent=11 // pred_check_branch
          %554 = sbr.rel (%p552) target = $region28
        $region27: #{tpu_custom_call.1} parent=11 // pred_region
          _
        $region28: #{tpu_custom_call.1} parent=11 // pred_fallthru
          _
        // Predicated region
        $region29: #{tpu_custom_call.1} parent=11 // pred_check
          %p555 = pneg %p206
        $region30: #{tpu_custom_call.1} parent=11 // pred_check_branch
          %557 = sbr.rel (%p555) target = $region32
        $region31: #{tpu_custom_call.1} parent=11 // pred_region
          _
        $region32: #{tpu_custom_call.1} parent=11 // pred_fallthru
          _
        // Predicated region
        $region33: #{tpu_custom_call.1} parent=11 // pred_check
          %p558 = pneg %p227
        $region34: #{tpu_custom_call.1} parent=11 // pred_check_branch
          %560 = sbr.rel (%p558) target = $region36
        $region35: #{tpu_custom_call.1} parent=11 // pred_region
          _
        $region36: #{tpu_custom_call.1} parent=11 // pred_fallthru
          _
        // Predicated region
        $region37: #{tpu_custom_call.1} parent=11 // pred_check
          %p561 = pneg %p248
        $region38: #{tpu_custom_call.1} parent=11 // pred_check_branch
          %563 = sbr.rel (%p561) target = $region40
        $region39: #{tpu_custom_call.1} parent=11 // pred_region
          _
        $region40: #{tpu_custom_call.1} parent=11 // pred_fallthru
          _
        // Predicated region
        $region41: #{tpu_custom_call.1} parent=11 // pred_check
          %p564 = pneg %p269
        $region42: #{tpu_custom_call.1} parent=11 // pred_check_branch
          %566 = sbr.rel (%p564) target = $region44
        $region43: #{tpu_custom_call.1} parent=11 // pred_region
          %s568 = ssub.s32 16, 16
          %569 = vsyncadd [#allocation14], %s568
          %s571 = sshll.u32 [#allocation13], 4
          %s572 = int_to_ptr.vmem [resolvable:$true] %s571
          %574 = dma.hbm_to_vmem [thread:$0]  %s9, 16, %s572, [#allocation14]
        $region44: #{tpu_custom_call.1} parent=11 // pred_fallthru
          _
        // Predicated region
        $region45: #{tpu_custom_call.1} parent=11 // pred_check
          %p575 = pneg %p290
        $region46: #{tpu_custom_call.1} parent=11 // pred_check_branch
          %577 = sbr.rel (%p575) target = $region48
        $region47: #{tpu_custom_call.1} parent=11 // pred_region
          _
        $region48: #{tpu_custom_call.1} parent=11 // pred_fallthru
          _
        // Predicated region
        $region49: #{tpu_custom_call.1} parent=11 // pred_check
          %p578 = pneg %p311
        $region50: #{tpu_custom_call.1} parent=11 // pred_check_branch
          %580 = sbr.rel (%p578) target = $region52
        $region51: #{tpu_custom_call.1} parent=11 // pred_region
          _
        $region52: #{tpu_custom_call.1} parent=11 // pred_fallthru
          _
        // Predicated region
        $region53: #{tpu_custom_call.1} parent=11 // pred_check
          %p581 = pneg %p332
        $region54: #{tpu_custom_call.1} parent=11 // pred_check_branch
          %583 = sbr.rel (%p581) target = $region56
        $region55: #{tpu_custom_call.1} parent=11 // pred_region
          _
        $region56: #{tpu_custom_call.1} parent=11 // pred_fallthru
          _
        // Predicated region
        $region57: #{tpu_custom_call.1} parent=11 // pred_check
          %p584 = pneg %p353
        $region58: #{tpu_custom_call.1} parent=11 // pred_check_branch
          %586 = sbr.rel (%p584) target = $region60
        $region59: #{tpu_custom_call.1} parent=11 // pred_region
          _
        $region60: #{tpu_custom_call.1} parent=11 // pred_fallthru
          _
        // Predicated region
        $region61: #{tpu_custom_call.1} parent=11 // pred_check
          %p587 = pneg %p374
        $region62: #{tpu_custom_call.1} parent=11 // pred_check_branch
          %589 = sbr.rel (%p587) target = $region64
        $region63: #{tpu_custom_call.1} parent=11 // pred_region
          _
        $region64: #{tpu_custom_call.1} parent=11 // pred_fallthru
          _
        // Predicated region
        $region65: #{tpu_custom_call.1} parent=11 // pred_check
          %p590 = pneg %p395
        $region66: #{tpu_custom_call.1} parent=11 // pred_check_branch
          %592 = sbr.rel (%p590) target = $region68
        $region67: #{tpu_custom_call.1} parent=11 // pred_region
          _
        $region68: #{tpu_custom_call.1} parent=11 // pred_fallthru
          _
        // Predicated region
        $region69: #{tpu_custom_call.1} parent=11 // pred_check
          %p593 = pneg %p416
        $region70: #{tpu_custom_call.1} parent=11 // pred_check_branch
          %595 = sbr.rel (%p593) target = $region72
        $region71: #{tpu_custom_call.1} parent=11 // pred_region
          _
        $region72: #{tpu_custom_call.1} parent=11 // pred_fallthru
          _
        // Predicated region
        $region73: #{tpu_custom_call.1} parent=11 // pred_check
          %p596 = pneg %p437
        $region74: #{tpu_custom_call.1} parent=11 // pred_check_branch
          %598 = sbr.rel (%p596) target = $region76
        $region75: #{tpu_custom_call.1} parent=11 // pred_region
          _
        $region76: #{tpu_custom_call.1} parent=11 // pred_fallthru
          _
        // Predicated region
        $region77: #{tpu_custom_call.1} parent=11 // pred_check
          %p599 = pneg %p458
        $region78: #{tpu_custom_call.1} parent=11 // pred_check_branch
          %601 = sbr.rel (%p599) target = $region80
        $region79: #{tpu_custom_call.1} parent=11 // pred_region
          _
        $region80: #{tpu_custom_call.1} parent=11 // pred_fallthru
          _
      $region12: #{tpu_custom_call.1} parent=5 // pred_fallthru
        _
      %p602 = scmp.lt.s32.totalorder %s37, 6
      // Predicated region
      $region81: #{tpu_custom_call.1} parent=5 // pred_check
        %p603 = pneg %p602
      $region82: #{tpu_custom_call.1} parent=5 // pred_check_branch
        %605 = sbr.rel (%p603) target = $region84
      $region83: #{tpu_custom_call.1} parent=5 // pred_region
        // Predicated region
        $region85: #{tpu_custom_call.1} parent=83 // pred_check
          %p606 = pneg %p69
        $region86: #{tpu_custom_call.1} parent=83 // pred_check_branch
          %608 = sbr.rel (%p606) target = $region88
        $region87: #{tpu_custom_call.1} parent=83 // pred_region
          %p609 = scmp.lt.s32.totalorder %s44, 1
          %s610 = scalar_select %p609, %s44, 1
          %s611 = smul.addr %s610, 8
          %s612 = scalar_lea.vmem %s0, %s611
        $region88: #{tpu_custom_call.1} parent=83 // pred_fallthru
          _
        // Predicated region
        $region89: #{tpu_custom_call.1} parent=83 // pred_check
          %p613 = pneg %p116
        $region90: #{tpu_custom_call.1} parent=83 // pred_check_branch
          %615 = sbr.rel (%p613) target = $region92
        $region91: #{tpu_custom_call.1} parent=83 // pred_region
          %s616 = sand.u32 %s37, 1
          %s617 = scalar_lea.sflag [#allocation11], %s616
          %s618 = sand.u32 %s106, 1
          %s619 = scalar_lea.vmem [#allocation10], %s618
          %s621 = ssub.s32 16, 16
          %622 = vsyncadd %s617, %s621
          %s623 = smul.addr %s45, 16
          %s624 = scalar_lea.hbm %s2, %s623
          %s626 = sshll.u32 %s619, 4
          %s627 = int_to_ptr.vmem [resolvable:$true] %s626
          %629 = dma.hbm_to_vmem [thread:$0]  %s624, 16, %s627, %s617
        $region92: #{tpu_custom_call.1} parent=83 // pred_fallthru
          _
      $region84: #{tpu_custom_call.1} parent=5 // pred_fallthru
        _
      %p630 = scmp.le.s32.totalorder 1, %s37
      %p631 = scmp.lt.s32.totalorder %s37, 7
      %p632 = pnand %p630, %p631
      %p633 = pneg %p632
      // Predicated region
      $region93: #{tpu_custom_call.1} parent=5 // pred_check
        _
      $region94: #{tpu_custom_call.1} parent=5 // pred_check_branch
        %635 = sbr.rel (%p632) target = $region96
      $region95: #{tpu_custom_call.1} parent=5 // pred_region
        %s636 = ssub.s32 %s37, 1
        // Predicated region
        $region97: #{tpu_custom_call.1} parent=95 // pred_check
          %p637 = pneg %p96
        $region98: #{tpu_custom_call.1} parent=95 // pred_check_branch
          %639 = sbr.rel (%p637) target = $region100
        $region99: #{tpu_custom_call.1} parent=95 // pred_region
          %640 = dma.done [#allocation8], 128
        $region100: #{tpu_custom_call.1} parent=95 // pred_fallthru
          _
        %s641 = sand.u32 %s42, 1
        %s642 = scalar_lea.sflag [#allocation11], %s641
        %s643 = sand.u32 %s109, 1
        %s644 = scalar_lea.vmem [#allocation10], %s643
        // Predicated region
        $region101: #{tpu_custom_call.1} parent=95 // pred_check
          %p645 = pneg %p122
        $region102: #{tpu_custom_call.1} parent=95 // pred_check_branch
          %647 = sbr.rel (%p645) target = $region104
        $region103: #{tpu_custom_call.1} parent=95 // pred_region
          %648 = dma.done %s642, 16
        $region104: #{tpu_custom_call.1} parent=95 // pred_fallthru
          _
        // Predicated region
        $region105: #{tpu_custom_call.1} parent=95 // pred_check
          %p649 = pneg %p143
        $region106: #{tpu_custom_call.1} parent=95 // pred_check_branch
          %651 = sbr.rel (%p649) target = $region108
        $region107: #{tpu_custom_call.1} parent=95 // pred_region
          %652 = dma.done [#allocation11], 128
        $region108: #{tpu_custom_call.1} parent=95 // pred_fallthru
          _
        // Predicated region
        $region109: #{tpu_custom_call.1} parent=95 // pred_check
          %p653 = pneg %p269
        $region110: #{tpu_custom_call.1} parent=95 // pred_check_branch
          %655 = sbr.rel (%p653) target = $region112
        $region111: #{tpu_custom_call.1} parent=95 // pred_region
          %656 = dma.done [#allocation14], 16
        $region112: #{tpu_custom_call.1} parent=95 // pred_fallthru
          _
        %p657 = scmp.lt.s32.totalorder %s46, 1
        %s658 = scalar_select %p657, %s46, 1
        %s659 = smul.addr %s658, 8
        %s660 = scalar_lea.vmem %s0, %s659
        %p661 = pneg %p75
        %p662 = pneg %p72
        %p663 = pneg %p96
        %p664 = pneg %p93
        %s665 = sand.u32 %s42, 1
        %s666 = scalar_lea.sflag [#allocation11], %s665
        %s667 = sand.u32 %s109, 1
        %s668 = scalar_lea.vmem [#allocation10], %s667
        %p669 = pneg %p122
        %p670 = pneg %p119
        %p671 = pneg %p143
        %p672 = pneg %p140
        %p673 = pneg %p164
        %p674 = pneg %p161
        %p675 = pneg %p185
        %p676 = pneg %p182
        %p677 = pneg %p206
        %p678 = pneg %p203
        %p679 = pneg %p227
        %p680 = pneg %p224
        %p681 = pneg %p248
        %p682 = pneg %p245
        %p683 = pneg %p269
        %p684 = pneg %p266
        %p685 = pneg %p290
        %p686 = pneg %p287
        %p687 = pneg %p311
        %p688 = pneg %p308
        %p689 = pneg %p332
        %p690 = pneg %p329
        %p691 = pneg %p353
        %p692 = pneg %p350
        %p693 = pneg %p374
        %p694 = pneg %p371
        %p695 = pneg %p395
        %p696 = pneg %p392
        %p697 = pneg %p416
        %p698 = pneg %p413
        %p699 = pneg %p437
        %p700 = pneg %p434
        %p701 = pneg %p458
        %p702 = pneg %p455
        %p703 = pneg %p484
        %p704 = pneg %p481
        %s705 = sand.u32 %s471, 1
        %s706 = scalar_lea.sflag [#allocation9], %s705
        %s707 = sand.u32 %s471, 1
        %s708 = smul.addr %s707, 8
        %s709 = scalar_lea.vmem [#allocation15], %s708
        %p710 = pneg %p510
        %p711 = pneg %p507
        %p712 = scmp.lt.s32.totalorder %s46, 1
        %s713 = scalar_select %p712, %s46, 1
        %s714 = smul.addr %s713, 8
        %s715 = scalar_lea.vmem %s20, %s714
        %p716 = scmp.lt.s32.totalorder %s46, 1
        %s717 = scalar_select %p716, %s46, 1
        %s718 = smul.addr %s717, 8
        %s719 = scalar_lea.vmem %s0, %s718
        %p720 = scmp.lt.s32.totalorder %s46, 1
        %s721 = scalar_select %p720, %s46, 1
        %s722 = smul.addr %s721, 8
        %s723 = scalar_lea.vmem %s20, %s722
        %p725 = scmp.eq.s32.totalorder %s47, 0
        // Predicated region
        $region113: #{tpu_custom_call.1} parent=95 // pred_check
          %p726 = pneg %p725
        $region114: #{tpu_custom_call.1} parent=95 // pred_check_branch
          %728 = sbr.rel (%p726) target = $region116
        $region115: #{tpu_custom_call.1} parent=95 // pred_region
          %v729 = vld [vmem:[%s719] sm:$0xff]
          %v730 = vpack.c.bf16 %v729, %v729
          %v731 = vld [vmem:[#allocation12] sm:$0xf]
          %v732 = vld [vmem:[#allocation12 + $0x4] sm:$0xf]
          %v733 = vld [vmem:[%s4] sm:$0x1]
          %v735 = vlaneseq
          %v736 = vshrl.u32 %v735, 7
          %v737 = vsub.s32 0, %v736
          %v738 = vrot.slane %v733, %v737
          %v742 = vunpack.c.l.b16 %v731
          %v743 = vunpack.c.l.b16 %v732
          %v744 = vpack.c.b16 %v743, %v742
          %vm746 = vcmask 130048
          %v748 = vsel %vm746, %v730, 0
          %750 = vmatprep.subr.bf16.mxu0 0
          %751 = vmatpush1.bf16.msra.mxu0 %v744
          %752 = vmatprep.subr.bf16.mxu0 0
          %753 = vmatpush1.bf16.msra.mxu0 0
          %754 = vmatprep.subr.bf16.mxu0 0
          %755 = vmatpush1.bf16.msra.mxu0 0
          %756 = vmatprep.subr.bf16.mxu0 0
          %757 = vmatpush1.bf16.msra.mxu0 0
          %758 = vmatprep.subr.bf16.mxu0 0
          %759 = vmatpush1.bf16.msra.mxu0 0
          %760 = vmatprep.subr.bf16.mxu0 0
          %761 = vmatpush1.bf16.msra.mxu0 0
          %762 = vmatprep.subr.bf16.mxu0 0
          %763 = vmatpush1.bf16.msra.mxu0 0
          %764 = vmatprep.subr.bf16.mxu0 0
          %765 = vmatpush1.bf16.msra.mxu0 0
          %766 = vmatprep.subr.bf16.mxu0 0
          %767 = vmatpush1.bf16.msra.mxu0 0
          %768 = vmatprep.subr.bf16.mxu0 0
          %769 = vmatpush1.bf16.msra.mxu0 0
          %770 = vmatprep.subr.bf16.mxu0 0
          %771 = vmatpush1.bf16.msra.mxu0 0
          %772 = vmatprep.subr.bf16.mxu0 0
          %773 = vmatpush1.bf16.msra.mxu0 0
          %774 = vmatprep.subr.bf16.mxu0 0
          %775 = vmatpush1.bf16.msra.mxu0 0
          %776 = vmatprep.subr.bf16.mxu0 0
          %777 = vmatpush1.bf16.msra.mxu0 0
          %778 = vmatprep.subr.bf16.mxu0 0
          %779 = vmatpush1.bf16.msra.mxu0 0
          %780 = vmatprep.subr.bf16.mxu0 0
          %781 = vmatpush1.bf16.msra.mxu0 0
          %782 = vmatprep.mubr.bf16.mxu0 0
          %783 = vmatmul.mubr.bf16.gmra.mrb[0].mxu0 %v748
          %v784 = vpop.f32.mrb[0].mxu0
          %v785 = vadd.f32 %v738, %v784
          %v786 = vpop.f32.mrb[0].mxu0
          %v787 = vpop.f32.mrb[0].mxu0
          %v788 = vpop.f32.mrb[0].mxu0
          %789 = vdwg.mxu0
          %vm790 = vcmask 261120
          %791 = vst.msk [vmem:[#allocation2] sm:$0xff] %vm790, %v785
          %vm792 = vcmask 7168
          %793 = vst.msk [vmem:[#allocation3] sm:$0xff] %vm792, 0.0
          %794 = vst.msk [vmem:[#allocation4] sm:$0xff] %vm792, 0.0
          %795 = vst.msk [vmem:[#allocation5] sm:$0xff] %vm792, 0.0
          %796 = vst.msk [vmem:[%s709] sm:$0xff] %vm790, 0.0
        $region116: #{tpu_custom_call.1} parent=95 // pred_fallthru
          _
        %v797 = vld [vmem:[#allocation2] sm:$0xff]
        %v798 = vld [vmem:[#allocation7] sm:$0xff]
        %v799 = vadd.f32 %v797, %v798
        %v800 = vld [vmem:[%s644] sm:$0x1]
        %v802 = vlaneseq
        %v803 = vshrl.u32 %v802, 7
        %v804 = vsub.s32 0, %v803
        %v805 = vrot.slane %v800, %v804
        %v807 = vadd.f32 %v799, %v805
        %v808 = vld [vmem:[%s5] sm:$0xff]
        %v809 = vld [vmem:[%s5 + $0x8] sm:$0xff]
        %v810 = vld [vmem:[%s5 + $0x10] sm:$0xff]
        %v811 = vld [vmem:[%s5 + $0x18] sm:$0xff]
        %v812 = vld [vmem:[#allocation6] sm:$0x1]
        %v814 = vlaneseq
        %v815 = vshrl.u32 %v814, 7
        %v816 = vsub.s32 0, %v815
        %v817 = vrot.slane %v812, %v816
        %vm819 = vcmask 261120
        %v821 = vsel %vm819, %v807, 0
        %823 = vmatprep.subr.mxu0 0.0
        %824 = vmatpush1.msra.mxu0 %v808
        %825 = vmatprep.subr.mxu0 0.0
        %826 = vmatpush1.msra.mxu0 %v809
        %827 = vmatprep.subr.mxu0 0.0
        %828 = vmatpush1.msra.mxu0 %v810
        %829 = vmatprep.subr.mxu0 0.0
        %830 = vmatpush1.msra.mxu0 %v811
        %831 = vmatprep.subr.mxu0 0.0
        %832 = vmatpush1.msra.mxu0 0.0
        %833 = vmatprep.subr.mxu0 0.0
        %834 = vmatpush1.msra.mxu0 0.0
        %835 = vmatprep.subr.mxu0 0.0
        %836 = vmatpush1.msra.mxu0 0.0
        %837 = vmatprep.subr.mxu0 0.0
        %838 = vmatpush1.msra.mxu0 0.0
        %839 = vmatprep.subr.mxu0 0.0
        %840 = vmatpush1.msra.mxu0 0.0
        %841 = vmatprep.subr.mxu0 0.0
        %842 = vmatpush1.msra.mxu0 0.0
        %843 = vmatprep.subr.mxu0 0.0
        %844 = vmatpush1.msra.mxu0 0.0
        %845 = vmatprep.subr.mxu0 0.0
        %846 = vmatpush1.msra.mxu0 0.0
        %847 = vmatprep.subr.mxu0 0.0
        %848 = vmatpush1.msra.mxu0 0.0
        %849 = vmatprep.subr.mxu0 0.0
        %850 = vmatpush1.msra.mxu0 0.0
        %851 = vmatprep.subr.mxu0 0.0
        %852 = vmatpush1.msra.mxu0 0.0
        %853 = vmatprep.subr.mxu0 0.0
        %854 = vmatpush1.msra.mxu0 0.0
        %855 = vmatprep.subr.mxu0 0.0
        %856 = vmatpush1.msra.mxu0 0.0
        %857 = vmatprep.subr.mxu0 0.0
        %858 = vmatpush1.msra.mxu0 0.0
        %859 = vmatprep.subr.mxu0 0.0
        %860 = vmatpush1.msra.mxu0 0.0
        %861 = vmatprep.subr.mxu0 0.0
        %862 = vmatpush1.msra.mxu0 0.0
        %863 = vmatprep.subr.mxu0 0.0
        %864 = vmatpush1.msra.mxu0 0.0
        %865 = vmatprep.subr.mxu0 0.0
        %866 = vmatpush1.msra.mxu0 0.0
        %867 = vmatprep.subr.mxu0 0.0
        %868 = vmatpush1.msra.mxu0 0.0
        %869 = vmatprep.subr.mxu0 0.0
        %870 = vmatpush1.msra.mxu0 0.0
        %871 = vmatprep.subr.mxu0 0.0
        %872 = vmatpush1.msra.mxu0 0.0
        %873 = vmatprep.subr.mxu0 0.0
        %874 = vmatpush1.msra.mxu0 0.0
        %875 = vmatprep.subr.mxu0 0.0
        %876 = vmatpush1.msra.mxu0 0.0
        %877 = vmatprep.subr.mxu0 0.0
        %878 = vmatpush1.msra.mxu0 0.0
        %879 = vmatprep.subr.mxu0 0.0
        %880 = vmatpush1.msra.mxu0 0.0
        %881 = vmatprep.subr.mxu0 0.0
        %882 = vmatpush1.msra.mxu0 0.0
        %883 = vmatprep.subr.mxu0 0.0
        %884 = vmatpush1.msra.mxu0 0.0
        %885 = vmatprep.subr.mxu0 0.0
        %886 = vmatpush1.msra.mxu0 0.0
        %887 = vmatprep.mubr.f32.mxu0 0.0
        %888 = vmatmul.mubr.f32.gmra.mrb[0].mxu0 %v821
        %v889 = vpop.f32.mrb[0].mxu0
        %v890 = vadd.f32 %v817, %v889
        %v891 = vpop.f32.mrb[0].mxu0
        %892 = vdwg.mxu0
        %v893 = vsub.f32 0.0, %v890
        %v894 = vmul.f32 %v893, 1.442695
        %v895 = vpow.pop %v894
        %v896 = vadd.f32 %v895, 1.0
        %v897 = vrcp.pop %v896
        %v898 = vmul.f32 1.0, %v897
        %v899 = vld [vmem:[#allocation3] sm:$0xff]
        %vm900 = vcmp.lt.f32.partialorder %v899, 1.0
        %v901 = vsel %vm900, 1, 0
        %v902 = vcvt.s32.f32 %v901
        %v903 = vmul.f32 %v898, %v902
        %v904 = vadd.f32 %v899, %v903
        %vm905 = vcmp.gt.f32.partialorder %v904, 0.9
        %v906 = vsel %vm905, 1, 0
        %v907 = vcvt.s32.f32 %v906
        %v908 = vmul.f32 %v907, %v902
        %vm909 = vcmp.le.f32.partialorder %v904, 0.9
        %v910 = vsel %vm909, 1, 0
        %v911 = vcvt.s32.f32 %v910
        %v912 = vmul.f32 %v911, %v902
        %v913 = vmul.f32 %v898, %v912
        %v914 = vadd.f32 %v899, %v913
        %v915 = vld [vmem:[#allocation4] sm:$0xff]
        %v916 = vsub.f32 1.0, %v914
        %v917 = vmul.f32 %v908, %v916
        %v918 = vadd.f32 %v915, %v917
        %v919 = vmul.f32 %v908, %v918
        %v920 = vadd.f32 %v914, %v919
        %v921 = vld [vmem:[#allocation5] sm:$0xff]
        %v922 = vadd.f32 %v921, %v912
        %v923 = vadd.f32 %v922, %v908
        %v924 = vadd.f32 %v913, %v919
        %v925 = vsel %vm819, %v807, 0.0
        %926 = vadd.xlane.f32.xlu0 %v925
        %v927 = vpop.xlane.xlu0 %926
        %v928 = vrcp.pop 32.0
        %v929 = vmul.f32 %v927, %v928
        %v930 = vsub.f32 %v807, %v929
        %v931 = vmul.f32 %v930, %v930
        %v932 = vsel %vm819, %v931, 0.0
        %933 = vadd.xlane.f32.xlu0 %v932
        %v934 = vpop.xlane.xlu0 %933
        %v935 = vrcp.pop 31.0
        %v936 = vmul.f32 %v934, %v935
        %v937 = vld [vmem:[%s7] sm:$0x1]
        %v939 = vlaneseq
        %v940 = vshrl.u32 %v939, 7
        %v941 = vsub.s32 0, %v940
        %v942 = vrot.slane %v937, %v941
        %v944 = vmul.f32 %v942, %v930
        %v945 = vrsqrt.pop %v936
        %v946 = vmul.f32 %v936, %v945
        %vm947 = vcmp.eq.f32.partialorder %v936, inf
        %v948 = vsel %vm947, %v936, %v946
        %vm949 = vcmp.eq.f32.partialorder %v936, 0.0
        %v950 = vand.u32 %v936, 2147483648
        %v951 = vsel %vm949, %v950, %v948
        %v952 = vadd.f32 %v951, 1e-06
        %v953 = vrcp.pop %v952
        %v954 = vmul.f32 %v944, %v953
        %v955 = vld [vmem:[%s8] sm:$0x1]
        %v957 = vlaneseq
        %v958 = vshrl.u32 %v957, 7
        %v959 = vsub.s32 0, %v958
        %v960 = vrot.slane %v955, %v959
        %v962 = vadd.f32 %v954, %v960
        %v963 = vpack.c.bf16 %v962, %v962
        %v964 = vld [vmem:[%s11] sm:$0xf]
        %v965 = vld [vmem:[%s11 + $0x4] sm:$0xf]
        %v966 = vld [vmem:[%s11 + $0x8] sm:$0xf]
        %v967 = vld [vmem:[%s11 + $0xc] sm:$0xf]
        %v972 = vunpack.c.l.b16 %v964
        %v973 = vunpack.c.l.b16 %v965
        %v974 = vunpack.c.l.b16 %v966
        %v975 = vunpack.c.l.b16 %v967
        %v976 = vpack.c.b16 %v973, %v972
        %v977 = vpack.c.b16 %v975, %v974
        %v981 = vsel %vm819, %v963, 0
        %983 = vmatprep.subr.bf16.mxu0 0
        %984 = vmatpush1.bf16.msra.mxu0 %v976
        %985 = vmatprep.subr.bf16.mxu0 0
        %986 = vmatpush1.bf16.msra.mxu0 %v977
        %987 = vmatprep.subr.bf16.mxu0 0
        %988 = vmatpush1.bf16.msra.mxu0 0
        %989 = vmatprep.subr.bf16.mxu0 0
        %990 = vmatpush1.bf16.msra.mxu0 0
        %991 = vmatprep.subr.bf16.mxu0 0
        %992 = vmatpush1.bf16.msra.mxu0 0
        %993 = vmatprep.subr.bf16.mxu0 0
        %994 = vmatpush1.bf16.msra.mxu0 0
        %995 = vmatprep.subr.bf16.mxu0 0
        %996 = vmatpush1.bf16.msra.mxu0 0
        %997 = vmatprep.subr.bf16.mxu0 0
        %998 = vmatpush1.bf16.msra.mxu0 0
        %999 = vmatprep.subr.bf16.mxu0 0
        %1000 = vmatpush1.bf16.msra.mxu0 0
        %1001 = vmatprep.subr.bf16.mxu0 0
        %1002 = vmatpush1.bf16.msra.mxu0 0
        %1003 = vmatprep.subr.bf16.mxu0 0
        %1004 = vmatpush1.bf16.msra.mxu0 0
        %1005 = vmatprep.subr.bf16.mxu0 0
        %1006 = vmatpush1.bf16.msra.mxu0 0
        %1007 = vmatprep.subr.bf16.mxu0 0
        %1008 = vmatpush1.bf16.msra.mxu0 0
        %1009 = vmatprep.subr.bf16.mxu0 0
        %1010 = vmatpush1.bf16.msra.mxu0 0
        %1011 = vmatprep.subr.bf16.mxu0 0
        %1012 = vmatpush1.bf16.msra.mxu0 0
        %1013 = vmatprep.subr.bf16.mxu0 0
        %1014 = vmatpush1.bf16.msra.mxu0 0
        %1015 = vmatprep.mubr.bf16.mxu0 0
        %1016 = vmatmul.mubr.bf16.gmra.mrb[0].mxu0 %v981
        %v1017 = vpop.f32.mrb[0].mxu0
        %v1018 = vadd.f32 0.0, %v1017
        %v1019 = vpop.f32.mrb[0].mxu0
        %v1020 = vpop.f32.mrb[0].mxu0
        %v1021 = vpop.f32.mrb[0].mxu0
        %1022 = vdwg.mxu0
        %v1023 = vld [vmem:[%s12] sm:$0xf]
        %v1024 = vld [vmem:[%s12 + $0x4] sm:$0xf]
        %v1025 = vld [vmem:[%s12 + $0x8] sm:$0xf]
        %v1026 = vld [vmem:[%s12 + $0xc] sm:$0xf]
        %v1031 = vunpack.c.l.b16 %v1023
        %v1032 = vunpack.c.l.b16 %v1024
        %v1033 = vunpack.c.l.b16 %v1025
        %v1034 = vunpack.c.l.b16 %v1026
        %v1035 = vpack.c.b16 %v1032, %v1031
        %v1036 = vpack.c.b16 %v1034, %v1033
        %1039 = vmatprep.subr.bf16.mxu0 0
        %1040 = vmatpush1.bf16.msra.mxu0 %v1035
        %1041 = vmatprep.subr.bf16.mxu0 0
        %1042 = vmatpush1.bf16.msra.mxu0 %v1036
        %1043 = vmatprep.subr.bf16.mxu0 0
        %1044 = vmatpush1.bf16.msra.mxu0 0
        %1045 = vmatprep.subr.bf16.mxu0 0
        %1046 = vmatpush1.bf16.msra.mxu0 0
        %1047 = vmatprep.subr.bf16.mxu0 0
        %1048 = vmatpush1.bf16.msra.mxu0 0
        %1049 = vmatprep.subr.bf16.mxu0 0
        %1050 = vmatpush1.bf16.msra.mxu0 0
        %1051 = vmatprep.subr.bf16.mxu0 0
        %1052 = vmatpush1.bf16.msra.mxu0 0
        %1053 = vmatprep.subr.bf16.mxu0 0
        %1054 = vmatpush1.bf16.msra.mxu0 0
        %1055 = vmatprep.subr.bf16.mxu0 0
        %1056 = vmatpush1.bf16.msra.mxu0 0
        %1057 = vmatprep.subr.bf16.mxu0 0
        %1058 = vmatpush1.bf16.msra.mxu0 0
        %1059 = vmatprep.subr.bf16.mxu0 0
        %1060 = vmatpush1.bf16.msra.mxu0 0
        %1061 = vmatprep.subr.bf16.mxu0 0
        %1062 = vmatpush1.bf16.msra.mxu0 0
        %1063 = vmatprep.subr.bf16.mxu0 0
        %1064 = vmatpush1.bf16.msra.mxu0 0
        %1065 = vmatprep.subr.bf16.mxu0 0
        %1066 = vmatpush1.bf16.msra.mxu0 0
        %1067 = vmatprep.subr.bf16.mxu0 0
        %1068 = vmatpush1.bf16.msra.mxu0 0
        %1069 = vmatprep.subr.bf16.mxu0 0
        %1070 = vmatpush1.bf16.msra.mxu0 0
        %1071 = vmatprep.mubr.bf16.mxu0 0
        %1072 = vmatmul.mubr.bf16.gmra.mrb[0].mxu0 %v981
        %v1073 = vpop.f32.mrb[0].mxu0
        %v1074 = vadd.f32 0.0, %v1073
        %v1075 = vpop.f32.mrb[0].mxu0
        %v1076 = vpop.f32.mrb[0].mxu0
        %v1077 = vpop.f32.mrb[0].mxu0
        %1078 = vdwg.mxu0
        %v1079 = vld [vmem:[%s13] sm:$0xf]
        %v1080 = vld [vmem:[%s13 + $0x4] sm:$0xf]
        %v1081 = vld [vmem:[%s13 + $0x8] sm:$0xf]
        %v1082 = vld [vmem:[%s13 + $0xc] sm:$0xf]
        %v1087 = vunpack.c.l.b16 %v1079
        %v1088 = vunpack.c.l.b16 %v1080
        %v1089 = vunpack.c.l.b16 %v1081
        %v1090 = vunpack.c.l.b16 %v1082
        %v1091 = vpack.c.b16 %v1088, %v1087
        %v1092 = vpack.c.b16 %v1090, %v1089
        %1095 = vmatprep.subr.bf16.mxu0 0
        %1096 = vmatpush1.bf16.msra.mxu0 %v1091
        %1097 = vmatprep.subr.bf16.mxu0 0
        %1098 = vmatpush1.bf16.msra.mxu0 %v1092
        %1099 = vmatprep.subr.bf16.mxu0 0
        %1100 = vmatpush1.bf16.msra.mxu0 0
        %1101 = vmatprep.subr.bf16.mxu0 0
        %1102 = vmatpush1.bf16.msra.mxu0 0
        %1103 = vmatprep.subr.bf16.mxu0 0
        %1104 = vmatpush1.bf16.msra.mxu0 0
        %1105 = vmatprep.subr.bf16.mxu0 0
        %1106 = vmatpush1.bf16.msra.mxu0 0
        %1107 = vmatprep.subr.bf16.mxu0 0
        %1108 = vmatpush1.bf16.msra.mxu0 0
        %1109 = vmatprep.subr.bf16.mxu0 0
        %1110 = vmatpush1.bf16.msra.mxu0 0
        %1111 = vmatprep.subr.bf16.mxu0 0
        %1112 = vmatpush1.bf16.msra.mxu0 0
        %1113 = vmatprep.subr.bf16.mxu0 0
        %1114 = vmatpush1.bf16.msra.mxu0 0
        %1115 = vmatprep.subr.bf16.mxu0 0
        %1116 = vmatpush1.bf16.msra.mxu0 0
        %1117 = vmatprep.subr.bf16.mxu0 0
        %1118 = vmatpush1.bf16.msra.mxu0 0
        %1119 = vmatprep.subr.bf16.mxu0 0
        %1120 = vmatpush1.bf16.msra.mxu0 0
        %1121 = vmatprep.subr.bf16.mxu0 0
        %1122 = vmatpush1.bf16.msra.mxu0 0
        %1123 = vmatprep.subr.bf16.mxu0 0
        %1124 = vmatpush1.bf16.msra.mxu0 0
        %1125 = vmatprep.subr.bf16.mxu0 0
        %1126 = vmatpush1.bf16.msra.mxu0 0
        %1127 = vmatprep.mubr.bf16.mxu0 0
        %1128 = vmatmul.mubr.bf16.gmra.mrb[0].mxu0 %v981
        %v1129 = vpop.f32.mrb[0].mxu0
        %v1130 = vadd.f32 0.0, %v1129
        %v1131 = vpop.f32.mrb[0].mxu0
        %v1132 = vpop.f32.mrb[0].mxu0
        %v1133 = vpop.f32.mrb[0].mxu0
        %1134 = vdwg.mxu0
        %v1135 = vpack.c.bf16 %v1018, %v1018
        %v1136 = vpack.c.bf16 %v1074, %v1074
        %v1137 = vpack.c.bf16 %v1130, %v1130
        %vm1138 = vcmask 64512
        %v1140 = vsel %vm1138, %v1135, 0
        %v1143 = vsel %vm1138, %v1136, 0
        %1145 = vmatprep.subr.bf16.mxu0 0
        %1146 = vmatpush1.bf16.xpose.msra.mxu0 %v1143
        %1147 = vmatprep.subr.bf16.mxu0 0
        %1148 = vmatpush1.bf16.xpose.msra.mxu0 0
        %1149 = vmatprep.subr.bf16.mxu0 0
        %1150 = vmatpush1.bf16.xpose.msra.mxu0 0
        %1151 = vmatprep.subr.bf16.mxu0 0
        %1152 = vmatpush1.bf16.xpose.msra.mxu0 0
        %1153 = vmatprep.subr.bf16.mxu0 0
        %1154 = vmatpush1.bf16.xpose.msra.mxu0 0
        %1155 = vmatprep.subr.bf16.mxu0 0
        %1156 = vmatpush1.bf16.xpose.msra.mxu0 0
        %1157 = vmatprep.subr.bf16.mxu0 0
        %1158 = vmatpush1.bf16.xpose.msra.mxu0 0
        %1159 = vmatprep.subr.bf16.mxu0 0
        %1160 = vmatpush1.bf16.xpose.msra.mxu0 0
        %1161 = vmatprep.subr.bf16.mxu0 0
        %1162 = vmatpush1.bf16.xpose.msra.mxu0 0
        %1163 = vmatprep.subr.bf16.mxu0 0
        %1164 = vmatpush1.bf16.xpose.msra.mxu0 0
        %1165 = vmatprep.subr.bf16.mxu0 0
        %1166 = vmatpush1.bf16.xpose.msra.mxu0 0
        %1167 = vmatprep.subr.bf16.mxu0 0
        %1168 = vmatpush1.bf16.xpose.msra.mxu0 0
        %1169 = vmatprep.subr.bf16.mxu0 0
        %1170 = vmatpush1.bf16.xpose.msra.mxu0 0
        %1171 = vmatprep.subr.bf16.mxu0 0
        %1172 = vmatpush1.bf16.xpose.msra.mxu0 0
        %1173 = vmatprep.subr.bf16.mxu0 0
        %1174 = vmatpush1.bf16.xpose.msra.mxu0 0
        %1175 = vmatprep.subr.bf16.mxu0 0
        %1176 = vmatpush1.bf16.xpose.msra.mxu0 0
        %1177 = vmatprep.mubr.bf16.mxu0 0
        %1178 = vmatmul.mubr.bf16.gmra.mrb[0].mxu0 %v1140
        %v1179 = vpop.f32.mrb[0].mxu0
        %v1180 = vadd.f32 0.0, %v1179
        %v1181 = vpop.f32.mrb[0].mxu0
        %v1182 = vpop.f32.mrb[0].mxu0
        %v1183 = vpop.f32.mrb[0].mxu0
        %1184 = vdwg.mxu0
        %v1185 = vmul.f32 %v1180, 0.35355338
        %v1186 = vsel %vm1138, %v1185, -inf
        %1187 = vmax.xlane.f32.xlu0 %v1186
        %v1188 = vpop.xlane.xlu0 %1187
        %v1189 = vsub.f32 %v1185, %v1188
        %v1190 = vmul.f32 %v1189, 1.442695
        %v1191 = vpow.pop %v1190
        %v1192 = vsel %vm1138, %v1191, 0.0
        %1193 = vadd.xlane.f32.xlu0 %v1192
        %v1194 = vpop.xlane.xlu0 %1193
        %v1195 = vrcp.pop %v1194
        %v1196 = vmul.f32 %v1191, %v1195
        %v1197 = vpack.c.bf16 %v1196, %v1196
        %v1199 = vsel %vm1138, %v1197, 0
        %vm1201 = vcmask 1043456
        %v1203 = vsel %vm1201, %v1137, 0
        %1205 = vmatprep.subr.bf16.mxu0 0
        %1206 = vmatpush1.bf16.msra.mxu0 %v1203
        %1207 = vmatprep.subr.bf16.mxu0 0
        %1208 = vmatpush1.bf16.msra.mxu0 0
        %1209 = vmatprep.subr.bf16.mxu0 0
        %1210 = vmatpush1.bf16.msra.mxu0 0
        %1211 = vmatprep.subr.bf16.mxu0 0
        %1212 = vmatpush1.bf16.msra.mxu0 0
        %1213 = vmatprep.subr.bf16.mxu0 0
        %1214 = vmatpush1.bf16.msra.mxu0 0
        %1215 = vmatprep.subr.bf16.mxu0 0
        %1216 = vmatpush1.bf16.msra.mxu0 0
        %1217 = vmatprep.subr.bf16.mxu0 0
        %1218 = vmatpush1.bf16.msra.mxu0 0
        %1219 = vmatprep.subr.bf16.mxu0 0
        %1220 = vmatpush1.bf16.msra.mxu0 0
        %1221 = vmatprep.subr.bf16.mxu0 0
        %1222 = vmatpush1.bf16.msra.mxu0 0
        %1223 = vmatprep.subr.bf16.mxu0 0
        %1224 = vmatpush1.bf16.msra.mxu0 0
        %1225 = vmatprep.subr.bf16.mxu0 0
        %1226 = vmatpush1.bf16.msra.mxu0 0
        %1227 = vmatprep.subr.bf16.mxu0 0
        %1228 = vmatpush1.bf16.msra.mxu0 0
        %1229 = vmatprep.subr.bf16.mxu0 0
        %1230 = vmatpush1.bf16.msra.mxu0 0
        %1231 = vmatprep.subr.bf16.mxu0 0
        %1232 = vmatpush1.bf16.msra.mxu0 0
        %1233 = vmatprep.subr.bf16.mxu0 0
        %1234 = vmatpush1.bf16.msra.mxu0 0
        %1235 = vmatprep.subr.bf16.mxu0 0
        %1236 = vmatpush1.bf16.msra.mxu0 0
        %1237 = vmatprep.mubr.bf16.mxu0 0
        %1238 = vmatmul.mubr.bf16.gmra.mrb[0].mxu0 %v1199
        %v1239 = vpop.f32.mrb[0].mxu0
        %v1240 = vadd.f32 0.0, %v1239
        %v1241 = vpop.f32.mrb[0].mxu0
        %v1242 = vpop.f32.mrb[0].mxu0
        %v1243 = vpop.f32.mrb[0].mxu0
        %1244 = vdwg.mxu0
        %v1245 = vpack.c.bf16 %v1240, %v1240
        %v1246 = vld [vmem:[%s14] sm:$0xf]
        %1248 = vrot.lane.b32.xlu0 %v1135, 120
        %v1249 = vpop.permute.xlu0 %1248
        %1251 = vrot.lane.b32.xlu0 %v1136, 120
        %v1252 = vpop.permute.xlu0 %1251
        %v1254 = vsel %vm1138, %v1249, 0
        %v1257 = vsel %vm1138, %v1252, 0
        %1259 = vmatprep.subr.bf16.mxu0 0
        %1260 = vmatpush1.bf16.xpose.msra.mxu0 %v1257
        %1261 = vmatprep.subr.bf16.mxu0 0
        %1262 = vmatpush1.bf16.xpose.msra.mxu0 0
        %1263 = vmatprep.subr.bf16.mxu0 0
        %1264 = vmatpush1.bf16.xpose.msra.mxu0 0
        %1265 = vmatprep.subr.bf16.mxu0 0
        %1266 = vmatpush1.bf16.xpose.msra.mxu0 0
        %1267 = vmatprep.subr.bf16.mxu0 0
        %1268 = vmatpush1.bf16.xpose.msra.mxu0 0
        %1269 = vmatprep.subr.bf16.mxu0 0
        %1270 = vmatpush1.bf16.xpose.msra.mxu0 0
        %1271 = vmatprep.subr.bf16.mxu0 0
        %1272 = vmatpush1.bf16.xpose.msra.mxu0 0
        %1273 = vmatprep.subr.bf16.mxu0 0
        %1274 = vmatpush1.bf16.xpose.msra.mxu0 0
        %1275 = vmatprep.subr.bf16.mxu0 0
        %1276 = vmatpush1.bf16.xpose.msra.mxu0 0
        %1277 = vmatprep.subr.bf16.mxu0 0
        %1278 = vmatpush1.bf16.xpose.msra.mxu0 0
        %1279 = vmatprep.subr.bf16.mxu0 0
        %1280 = vmatpush1.bf16.xpose.msra.mxu0 0
        %1281 = vmatprep.subr.bf16.mxu0 0
        %1282 = vmatpush1.bf16.xpose.msra.mxu0 0
        %1283 = vmatprep.subr.bf16.mxu0 0
        %1284 = vmatpush1.bf16.xpose.msra.mxu0 0
        %1285 = vmatprep.subr.bf16.mxu0 0
        %1286 = vmatpush1.bf16.xpose.msra.mxu0 0
        %1287 = vmatprep.subr.bf16.mxu0 0
        %1288 = vmatpush1.bf16.xpose.msra.mxu0 0
        %1289 = vmatprep.subr.bf16.mxu0 0
        %1290 = vmatpush1.bf16.xpose.msra.mxu0 0
        %1291 = vmatprep.mubr.bf16.mxu0 0
        %1292 = vmatmul.mubr.bf16.gmra.mrb[0].mxu0 %v1254
        %v1293 = vpop.f32.mrb[0].mxu0
        %v1294 = vadd.f32 0.0, %v1293
        %v1295 = vpop.f32.mrb[0].mxu0
        %v1296 = vpop.f32.mrb[0].mxu0
        %v1297 = vpop.f32.mrb[0].mxu0
        %1298 = vdwg.mxu0
        %v1299 = vmul.f32 %v1294, 0.35355338
        %v1300 = vsel %vm1138, %v1299, -inf
        %1301 = vmax.xlane.f32.xlu0 %v1300
        %v1302 = vpop.xlane.xlu0 %1301
        %v1303 = vsub.f32 %v1299, %v1302
        %v1304 = vmul.f32 %v1303, 1.442695
        %v1305 = vpow.pop %v1304
        %v1306 = vsel %vm1138, %v1305, 0.0
        %1307 = vadd.xlane.f32.xlu0 %v1306
        %v1308 = vpop.xlane.xlu0 %1307
        %v1309 = vrcp.pop %v1308
        %v1310 = vmul.f32 %v1305, %v1309
        %v1311 = vpack.c.bf16 %v1310, %v1310
        %1313 = vrot.lane.b32.xlu0 %v1137, 120
        %v1314 = vpop.permute.xlu0 %1313
        %v1316 = vsel %vm1138, %v1311, 0
        %v1319 = vsel %vm1201, %v1314, 0
        %1321 = vmatprep.subr.bf16.mxu0 0
        %1322 = vmatpush1.bf16.msra.mxu0 %v1319
        %1323 = vmatprep.subr.bf16.mxu0 0
        %1324 = vmatpush1.bf16.msra.mxu0 0
        %1325 = vmatprep.subr.bf16.mxu0 0
        %1326 = vmatpush1.bf16.msra.mxu0 0
        %1327 = vmatprep.subr.bf16.mxu0 0
        %1328 = vmatpush1.bf16.msra.mxu0 0
        %1329 = vmatprep.subr.bf16.mxu0 0
        %1330 = vmatpush1.bf16.msra.mxu0 0
        %1331 = vmatprep.subr.bf16.mxu0 0
        %1332 = vmatpush1.bf16.msra.mxu0 0
        %1333 = vmatprep.subr.bf16.mxu0 0
        %1334 = vmatpush1.bf16.msra.mxu0 0
        %1335 = vmatprep.subr.bf16.mxu0 0
        %1336 = vmatpush1.bf16.msra.mxu0 0
        %1337 = vmatprep.subr.bf16.mxu0 0
        %1338 = vmatpush1.bf16.msra.mxu0 0
        %1339 = vmatprep.subr.bf16.mxu0 0
        %1340 = vmatpush1.bf16.msra.mxu0 0
        %1341 = vmatprep.subr.bf16.mxu0 0
        %1342 = vmatpush1.bf16.msra.mxu0 0
        %1343 = vmatprep.subr.bf16.mxu0 0
        %1344 = vmatpush1.bf16.msra.mxu0 0
        %1345 = vmatprep.subr.bf16.mxu0 0
        %1346 = vmatpush1.bf16.msra.mxu0 0
        %1347 = vmatprep.subr.bf16.mxu0 0
        %1348 = vmatpush1.bf16.msra.mxu0 0
        %1349 = vmatprep.subr.bf16.mxu0 0
        %1350 = vmatpush1.bf16.msra.mxu0 0
        %1351 = vmatprep.subr.bf16.mxu0 0
        %1352 = vmatpush1.bf16.msra.mxu0 0
        %1353 = vmatprep.mubr.bf16.mxu0 0
        %1354 = vmatmul.mubr.bf16.gmra.mrb[0].mxu0 %v1316
        %v1355 = vpop.f32.mrb[0].mxu0
        %v1356 = vadd.f32 0.0, %v1355
        %v1357 = vpop.f32.mrb[0].mxu0
        %v1358 = vpop.f32.mrb[0].mxu0
        %v1359 = vpop.f32.mrb[0].mxu0
        %1360 = vdwg.mxu0
        %v1361 = vpack.c.bf16 %v1356, %v1356
        %v1362 = vld [vmem:[%s14 + $0x4] sm:$0xf]
        %v1364 = vsel %vm1138, %v1361, 0
        %v1367 = vsel %vm1201, %v1362, 0
        %1369 = vmatprep.subr.bf16.mxu0 0
        %1370 = vmatpush1.bf16.msra.mxu0 %v1367
        %1371 = vmatprep.subr.bf16.mxu0 0
        %1372 = vmatpush1.bf16.msra.mxu0 0
        %1373 = vmatprep.subr.bf16.mxu0 0
        %1374 = vmatpush1.bf16.msra.mxu0 0
        %1375 = vmatprep.subr.bf16.mxu0 0
        %1376 = vmatpush1.bf16.msra.mxu0 0
        %1377 = vmatprep.subr.bf16.mxu0 0
        %1378 = vmatpush1.bf16.msra.mxu0 0
        %1379 = vmatprep.subr.bf16.mxu0 0
        %1380 = vmatpush1.bf16.msra.mxu0 0
        %1381 = vmatprep.subr.bf16.mxu0 0
        %1382 = vmatpush1.bf16.msra.mxu0 0
        %1383 = vmatprep.subr.bf16.mxu0 0
        %1384 = vmatpush1.bf16.msra.mxu0 0
        %1385 = vmatprep.subr.bf16.mxu0 0
        %1386 = vmatpush1.bf16.msra.mxu0 0
        %1387 = vmatprep.subr.bf16.mxu0 0
        %1388 = vmatpush1.bf16.msra.mxu0 0
        %1389 = vmatprep.subr.bf16.mxu0 0
        %1390 = vmatpush1.bf16.msra.mxu0 0
        %1391 = vmatprep.subr.bf16.mxu0 0
        %1392 = vmatpush1.bf16.msra.mxu0 0
        %1393 = vmatprep.subr.bf16.mxu0 0
        %1394 = vmatpush1.bf16.msra.mxu0 0
        %1395 = vmatprep.subr.bf16.mxu0 0
        %1396 = vmatpush1.bf16.msra.mxu0 0
        %1397 = vmatprep.subr.bf16.mxu0 0
        %1398 = vmatpush1.bf16.msra.mxu0 0
        %1399 = vmatprep.subr.bf16.mxu0 0
        %1400 = vmatpush1.bf16.msra.mxu0 0
        %1401 = vmatprep.mubr.bf16.mxu0 0
        %1402 = vmatmul.mubr.bf16.gmra.mrb[0].mxu0 %v1364
        %v1403 = vpop.f32.mrb[0].mxu0
        %v1404 = vadd.f32 0.0, %v1403
        %v1405 = vpop.f32.mrb[0].mxu0
        %v1406 = vpop.f32.mrb[0].mxu0
        %v1407 = vpop.f32.mrb[0].mxu0
        %1408 = vdwg.mxu0
        %v1410 = vsel %vm1138, %v1245, 0
        %v1413 = vsel %vm1201, %v1246, 0
        %1415 = vmatprep.subr.bf16.mxu0 0
        %1416 = vmatpush1.bf16.msra.mxu0 %v1413
        %1417 = vmatprep.subr.bf16.mxu0 0
        %1418 = vmatpush1.bf16.msra.mxu0 0
        %1419 = vmatprep.subr.bf16.mxu0 0
        %1420 = vmatpush1.bf16.msra.mxu0 0
        %1421 = vmatprep.subr.bf16.mxu0 0
        %1422 = vmatpush1.bf16.msra.mxu0 0
        %1423 = vmatprep.subr.bf16.mxu0 0
        %1424 = vmatpush1.bf16.msra.mxu0 0
        %1425 = vmatprep.subr.bf16.mxu0 0
        %1426 = vmatpush1.bf16.msra.mxu0 0
        %1427 = vmatprep.subr.bf16.mxu0 0
        %1428 = vmatpush1.bf16.msra.mxu0 0
        %1429 = vmatprep.subr.bf16.mxu0 0
        %1430 = vmatpush1.bf16.msra.mxu0 0
        %1431 = vmatprep.subr.bf16.mxu0 0
        %1432 = vmatpush1.bf16.msra.mxu0 0
        %1433 = vmatprep.subr.bf16.mxu0 0
        %1434 = vmatpush1.bf16.msra.mxu0 0
        %1435 = vmatprep.subr.bf16.mxu0 0
        %1436 = vmatpush1.bf16.msra.mxu0 0
        %1437 = vmatprep.subr.bf16.mxu0 0
        %1438 = vmatpush1.bf16.msra.mxu0 0
        %1439 = vmatprep.subr.bf16.mxu0 0
        %1440 = vmatpush1.bf16.msra.mxu0 0
        %1441 = vmatprep.subr.bf16.mxu0 0
        %1442 = vmatpush1.bf16.msra.mxu0 0
        %1443 = vmatprep.subr.bf16.mxu0 0
        %1444 = vmatpush1.bf16.msra.mxu0 0
        %1445 = vmatprep.subr.bf16.mxu0 0
        %1446 = vmatpush1.bf16.msra.mxu0 0
        %1447 = vmatprep.mubr.bf16.mxu0 0
        %1448 = vmatmul.mubr.bf16.gmra.mrb[0].mxu0 %v1410
        %v1449 = vpop.f32.mrb[0].mxu0
        %v1450 = vadd.f32 %v1404, %v1449
        %v1451 = vpop.f32.mrb[0].mxu0
        %v1452 = vpop.f32.mrb[0].mxu0
        %v1453 = vpop.f32.mrb[0].mxu0
        %1454 = vdwg.mxu0
        %1455 = vrot.lane.b32.xlu0 %v1135, 112
        %v1456 = vpop.permute.xlu0 %1455
        %1457 = vrot.lane.b32.xlu0 %v1136, 112
        %v1458 = vpop.permute.xlu0 %1457
        %v1460 = vsel %vm1138, %v1456, 0
        %v1463 = vsel %vm1138, %v1458, 0
        %1465 = vmatprep.subr.bf16.mxu0 0
        %1466 = vmatpush1.bf16.xpose.msra.mxu0 %v1463
        %1467 = vmatprep.subr.bf16.mxu0 0
        %1468 = vmatpush1.bf16.xpose.msra.mxu0 0
        %1469 = vmatprep.subr.bf16.mxu0 0
        %1470 = vmatpush1.bf16.xpose.msra.mxu0 0
        %1471 = vmatprep.subr.bf16.mxu0 0
        %1472 = vmatpush1.bf16.xpose.msra.mxu0 0
        %1473 = vmatprep.subr.bf16.mxu0 0
        %1474 = vmatpush1.bf16.xpose.msra.mxu0 0
        %1475 = vmatprep.subr.bf16.mxu0 0
        %1476 = vmatpush1.bf16.xpose.msra.mxu0 0
        %1477 = vmatprep.subr.bf16.mxu0 0
        %1478 = vmatpush1.bf16.xpose.msra.mxu0 0
        %1479 = vmatprep.subr.bf16.mxu0 0
        %1480 = vmatpush1.bf16.xpose.msra.mxu0 0
        %1481 = vmatprep.subr.bf16.mxu0 0
        %1482 = vmatpush1.bf16.xpose.msra.mxu0 0
        %1483 = vmatprep.subr.bf16.mxu0 0
        %1484 = vmatpush1.bf16.xpose.msra.mxu0 0
        %1485 = vmatprep.subr.bf16.mxu0 0
        %1486 = vmatpush1.bf16.xpose.msra.mxu0 0
        %1487 = vmatprep.subr.bf16.mxu0 0
        %1488 = vmatpush1.bf16.xpose.msra.mxu0 0
        %1489 = vmatprep.subr.bf16.mxu0 0
        %1490 = vmatpush1.bf16.xpose.msra.mxu0 0
        %1491 = vmatprep.subr.bf16.mxu0 0
        %1492 = vmatpush1.bf16.xpose.msra.mxu0 0
        %1493 = vmatprep.subr.bf16.mxu0 0
        %1494 = vmatpush1.bf16.xpose.msra.mxu0 0
        %1495 = vmatprep.subr.bf16.mxu0 0
        %1496 = vmatpush1.bf16.xpose.msra.mxu0 0
        %1497 = vmatprep.mubr.bf16.mxu0 0
        %1498 = vmatmul.mubr.bf16.gmra.mrb[0].mxu0 %v1460
        %v1499 = vpop.f32.mrb[0].mxu0
        %v1500 = vadd.f32 0.0, %v1499
        %v1501 = vpop.f32.mrb[0].mxu0
        %v1502 = vpop.f32.mrb[0].mxu0
        %v1503 = vpop.f32.mrb[0].mxu0
        %1504 = vdwg.mxu0
        %v1505 = vmul.f32 %v1500, 0.35355338
        %v1506 = vsel %vm1138, %v1505, -inf
        %1507 = vmax.xlane.f32.xlu0 %v1506
        %v1508 = vpop.xlane.xlu0 %1507
        %v1509 = vsub.f32 %v1505, %v1508
        %v1510 = vmul.f32 %v1509, 1.442695
        %v1511 = vpow.pop %v1510
        %v1512 = vsel %vm1138, %v1511, 0.0
        %1513 = vadd.xlane.f32.xlu0 %v1512
        %v1514 = vpop.xlane.xlu0 %1513
        %v1515 = vrcp.pop %v1514
        %v1516 = vmul.f32 %v1511, %v1515
        %v1517 = vpack.c.bf16 %v1516, %v1516
        %1518 = vrot.lane.b32.xlu0 %v1137, 112
        %v1519 = vpop.permute.xlu0 %1518
        %v1521 = vsel %vm1138, %v1517, 0
        %v1524 = vsel %vm1201, %v1519, 0
        %1526 = vmatprep.subr.bf16.mxu0 0
        %1527 = vmatpush1.bf16.msra.mxu0 %v1524
        %1528 = vmatprep.subr.bf16.mxu0 0
        %1529 = vmatpush1.bf16.msra.mxu0 0
        %1530 = vmatprep.subr.bf16.mxu0 0
        %1531 = vmatpush1.bf16.msra.mxu0 0
        %1532 = vmatprep.subr.bf16.mxu0 0
        %1533 = vmatpush1.bf16.msra.mxu0 0
        %1534 = vmatprep.subr.bf16.mxu0 0
        %1535 = vmatpush1.bf16.msra.mxu0 0
        %1536 = vmatprep.subr.bf16.mxu0 0
        %1537 = vmatpush1.bf16.msra.mxu0 0
        %1538 = vmatprep.subr.bf16.mxu0 0
        %1539 = vmatpush1.bf16.msra.mxu0 0
        %1540 = vmatprep.subr.bf16.mxu0 0
        %1541 = vmatpush1.bf16.msra.mxu0 0
        %1542 = vmatprep.subr.bf16.mxu0 0
        %1543 = vmatpush1.bf16.msra.mxu0 0
        %1544 = vmatprep.subr.bf16.mxu0 0
        %1545 = vmatpush1.bf16.msra.mxu0 0
        %1546 = vmatprep.subr.bf16.mxu0 0
        %1547 = vmatpush1.bf16.msra.mxu0 0
        %1548 = vmatprep.subr.bf16.mxu0 0
        %1549 = vmatpush1.bf16.msra.mxu0 0
        %1550 = vmatprep.subr.bf16.mxu0 0
        %1551 = vmatpush1.bf16.msra.mxu0 0
        %1552 = vmatprep.subr.bf16.mxu0 0
        %1553 = vmatpush1.bf16.msra.mxu0 0
        %1554 = vmatprep.subr.bf16.mxu0 0
        %1555 = vmatpush1.bf16.msra.mxu0 0
        %1556 = vmatprep.subr.bf16.mxu0 0
        %1557 = vmatpush1.bf16.msra.mxu0 0
        %1558 = vmatprep.mubr.bf16.mxu0 0
        %1559 = vmatmul.mubr.bf16.gmra.mrb[0].mxu0 %v1521
        %v1560 = vpop.f32.mrb[0].mxu0
        %v1561 = vadd.f32 0.0, %v1560
        %v1562 = vpop.f32.mrb[0].mxu0
        %v1563 = vpop.f32.mrb[0].mxu0
        %v1564 = vpop.f32.mrb[0].mxu0
        %1565 = vdwg.mxu0
        %v1566 = vpack.c.bf16 %v1561, %v1561
        %v1567 = vld [vmem:[%s14 + $0x8] sm:$0xf]
        %v1569 = vsel %vm1138, %v1566, 0
        %v1572 = vsel %vm1201, %v1567, 0
        %1574 = vmatprep.subr.bf16.mxu0 0
        %1575 = vmatpush1.bf16.msra.mxu0 %v1572
        %1576 = vmatprep.subr.bf16.mxu0 0
        %1577 = vmatpush1.bf16.msra.mxu0 0
        %1578 = vmatprep.subr.bf16.mxu0 0
        %1579 = vmatpush1.bf16.msra.mxu0 0
        %1580 = vmatprep.subr.bf16.mxu0 0
        %1581 = vmatpush1.bf16.msra.mxu0 0
        %1582 = vmatprep.subr.bf16.mxu0 0
        %1583 = vmatpush1.bf16.msra.mxu0 0
        %1584 = vmatprep.subr.bf16.mxu0 0
        %1585 = vmatpush1.bf16.msra.mxu0 0
        %1586 = vmatprep.subr.bf16.mxu0 0
        %1587 = vmatpush1.bf16.msra.mxu0 0
        %1588 = vmatprep.subr.bf16.mxu0 0
        %1589 = vmatpush1.bf16.msra.mxu0 0
        %1590 = vmatprep.subr.bf16.mxu0 0
        %1591 = vmatpush1.bf16.msra.mxu0 0
        %1592 = vmatprep.subr.bf16.mxu0 0
        %1593 = vmatpush1.bf16.msra.mxu0 0
        %1594 = vmatprep.subr.bf16.mxu0 0
        %1595 = vmatpush1.bf16.msra.mxu0 0
        %1596 = vmatprep.subr.bf16.mxu0 0
        %1597 = vmatpush1.bf16.msra.mxu0 0
        %1598 = vmatprep.subr.bf16.mxu0 0
        %1599 = vmatpush1.bf16.msra.mxu0 0
        %1600 = vmatprep.subr.bf16.mxu0 0
        %1601 = vmatpush1.bf16.msra.mxu0 0
        %1602 = vmatprep.subr.bf16.mxu0 0
        %1603 = vmatpush1.bf16.msra.mxu0 0
        %1604 = vmatprep.subr.bf16.mxu0 0
        %1605 = vmatpush1.bf16.msra.mxu0 0
        %1606 = vmatprep.mubr.bf16.mxu0 0
        %1607 = vmatmul.mubr.bf16.gmra.mrb[0].mxu0 %v1569
        %v1608 = vpop.f32.mrb[0].mxu0
        %v1609 = vadd.f32 0.0, %v1608
        %v1610 = vpop.f32.mrb[0].mxu0
        %v1611 = vpop.f32.mrb[0].mxu0
        %v1612 = vpop.f32.mrb[0].mxu0
        %1613 = vdwg.mxu0
        %v1614 = vadd.f32 %v1450, %v1609
        %1615 = vrot.lane.b32.xlu0 %v1135, 104
        %v1616 = vpop.permute.xlu0 %1615
        %1617 = vrot.lane.b32.xlu0 %v1136, 104
        %v1618 = vpop.permute.xlu0 %1617
        %v1620 = vsel %vm1138, %v1616, 0
        %v1623 = vsel %vm1138, %v1618, 0
        %1625 = vmatprep.subr.bf16.mxu0 0
        %1626 = vmatpush1.bf16.xpose.msra.mxu0 %v1623
        %1627 = vmatprep.subr.bf16.mxu0 0
        %1628 = vmatpush1.bf16.xpose.msra.mxu0 0
        %1629 = vmatprep.subr.bf16.mxu0 0
        %1630 = vmatpush1.bf16.xpose.msra.mxu0 0
        %1631 = vmatprep.subr.bf16.mxu0 0
        %1632 = vmatpush1.bf16.xpose.msra.mxu0 0
        %1633 = vmatprep.subr.bf16.mxu0 0
        %1634 = vmatpush1.bf16.xpose.msra.mxu0 0
        %1635 = vmatprep.subr.bf16.mxu0 0
        %1636 = vmatpush1.bf16.xpose.msra.mxu0 0
        %1637 = vmatprep.subr.bf16.mxu0 0
        %1638 = vmatpush1.bf16.xpose.msra.mxu0 0
        %1639 = vmatprep.subr.bf16.mxu0 0
        %1640 = vmatpush1.bf16.xpose.msra.mxu0 0
        %1641 = vmatprep.subr.bf16.mxu0 0
        %1642 = vmatpush1.bf16.xpose.msra.mxu0 0
        %1643 = vmatprep.subr.bf16.mxu0 0
        %1644 = vmatpush1.bf16.xpose.msra.mxu0 0
        %1645 = vmatprep.subr.bf16.mxu0 0
        %1646 = vmatpush1.bf16.xpose.msra.mxu0 0
        %1647 = vmatprep.subr.bf16.mxu0 0
        %1648 = vmatpush1.bf16.xpose.msra.mxu0 0
        %1649 = vmatprep.subr.bf16.mxu0 0
        %1650 = vmatpush1.bf16.xpose.msra.mxu0 0
        %1651 = vmatprep.subr.bf16.mxu0 0
        %1652 = vmatpush1.bf16.xpose.msra.mxu0 0
        %1653 = vmatprep.subr.bf16.mxu0 0
        %1654 = vmatpush1.bf16.xpose.msra.mxu0 0
        %1655 = vmatprep.subr.bf16.mxu0 0
        %1656 = vmatpush1.bf16.xpose.msra.mxu0 0
        %1657 = vmatprep.mubr.bf16.mxu0 0
        %1658 = vmatmul.mubr.bf16.gmra.mrb[0].mxu0 %v1620
        %v1659 = vpop.f32.mrb[0].mxu0
        %v1660 = vadd.f32 0.0, %v1659
        %v1661 = vpop.f32.mrb[0].mxu0
        %v1662 = vpop.f32.mrb[0].mxu0
        %v1663 = vpop.f32.mrb[0].mxu0
        %1664 = vdwg.mxu0
        %v1665 = vmul.f32 %v1660, 0.35355338
        %v1666 = vsel %vm1138, %v1665, -inf
        %1667 = vmax.xlane.f32.xlu0 %v1666
        %v1668 = vpop.xlane.xlu0 %1667
        %v1669 = vsub.f32 %v1665, %v1668
        %v1670 = vmul.f32 %v1669, 1.442695
        %v1671 = vpow.pop %v1670
        %v1672 = vsel %vm1138, %v1671, 0.0
        %1673 = vadd.xlane.f32.xlu0 %v1672
        %v1674 = vpop.xlane.xlu0 %1673
        %v1675 = vrcp.pop %v1674
        %v1676 = vmul.f32 %v1671, %v1675
        %v1677 = vpack.c.bf16 %v1676, %v1676
        %1678 = vrot.lane.b32.xlu0 %v1137, 104
        %v1679 = vpop.permute.xlu0 %1678
        %v1681 = vsel %vm1138, %v1677, 0
        %v1684 = vsel %vm1201, %v1679, 0
        %1686 = vmatprep.subr.bf16.mxu0 0
        %1687 = vmatpush1.bf16.msra.mxu0 %v1684
        %1688 = vmatprep.subr.bf16.mxu0 0
        %1689 = vmatpush1.bf16.msra.mxu0 0
        %1690 = vmatprep.subr.bf16.mxu0 0
        %1691 = vmatpush1.bf16.msra.mxu0 0
        %1692 = vmatprep.subr.bf16.mxu0 0
        %1693 = vmatpush1.bf16.msra.mxu0 0
        %1694 = vmatprep.subr.bf16.mxu0 0
        %1695 = vmatpush1.bf16.msra.mxu0 0
        %1696 = vmatprep.subr.bf16.mxu0 0
        %1697 = vmatpush1.bf16.msra.mxu0 0
        %1698 = vmatprep.subr.bf16.mxu0 0
        %1699 = vmatpush1.bf16.msra.mxu0 0
        %1700 = vmatprep.subr.bf16.mxu0 0
        %1701 = vmatpush1.bf16.msra.mxu0 0
        %1702 = vmatprep.subr.bf16.mxu0 0
        %1703 = vmatpush1.bf16.msra.mxu0 0
        %1704 = vmatprep.subr.bf16.mxu0 0
        %1705 = vmatpush1.bf16.msra.mxu0 0
        %1706 = vmatprep.subr.bf16.mxu0 0
        %1707 = vmatpush1.bf16.msra.mxu0 0
        %1708 = vmatprep.subr.bf16.mxu0 0
        %1709 = vmatpush1.bf16.msra.mxu0 0
        %1710 = vmatprep.subr.bf16.mxu0 0
        %1711 = vmatpush1.bf16.msra.mxu0 0
        %1712 = vmatprep.subr.bf16.mxu0 0
        %1713 = vmatpush1.bf16.msra.mxu0 0
        %1714 = vmatprep.subr.bf16.mxu0 0
        %1715 = vmatpush1.bf16.msra.mxu0 0
        %1716 = vmatprep.subr.bf16.mxu0 0
        %1717 = vmatpush1.bf16.msra.mxu0 0
        %1718 = vmatprep.mubr.bf16.mxu0 0
        %1719 = vmatmul.mubr.bf16.gmra.mrb[0].mxu0 %v1681
        %v1720 = vpop.f32.mrb[0].mxu0
        %v1721 = vadd.f32 0.0, %v1720
        %v1722 = vpop.f32.mrb[0].mxu0
        %v1723 = vpop.f32.mrb[0].mxu0
        %v1724 = vpop.f32.mrb[0].mxu0
        %1725 = vdwg.mxu0
        %v1726 = vpack.c.bf16 %v1721, %v1721
        %v1727 = vld [vmem:[%s14 + $0xc] sm:$0xf]
        %v1729 = vsel %vm1138, %v1726, 0
        %v1732 = vsel %vm1201, %v1727, 0
        %1734 = vmatprep.subr.bf16.mxu0 0
        %1735 = vmatpush1.bf16.msra.mxu0 %v1732
        %1736 = vmatprep.subr.bf16.mxu0 0
        %1737 = vmatpush1.bf16.msra.mxu0 0
        %1738 = vmatprep.subr.bf16.mxu0 0
        %1739 = vmatpush1.bf16.msra.mxu0 0
        %1740 = vmatprep.subr.bf16.mxu0 0
        %1741 = vmatpush1.bf16.msra.mxu0 0
        %1742 = vmatprep.subr.bf16.mxu0 0
        %1743 = vmatpush1.bf16.msra.mxu0 0
        %1744 = vmatprep.subr.bf16.mxu0 0
        %1745 = vmatpush1.bf16.msra.mxu0 0
        %1746 = vmatprep.subr.bf16.mxu0 0
        %1747 = vmatpush1.bf16.msra.mxu0 0
        %1748 = vmatprep.subr.bf16.mxu0 0
        %1749 = vmatpush1.bf16.msra.mxu0 0
        %1750 = vmatprep.subr.bf16.mxu0 0
        %1751 = vmatpush1.bf16.msra.mxu0 0
        %1752 = vmatprep.subr.bf16.mxu0 0
        %1753 = vmatpush1.bf16.msra.mxu0 0
        %1754 = vmatprep.subr.bf16.mxu0 0
        %1755 = vmatpush1.bf16.msra.mxu0 0
        %1756 = vmatprep.subr.bf16.mxu0 0
        %1757 = vmatpush1.bf16.msra.mxu0 0
        %1758 = vmatprep.subr.bf16.mxu0 0
        %1759 = vmatpush1.bf16.msra.mxu0 0
        %1760 = vmatprep.subr.bf16.mxu0 0
        %1761 = vmatpush1.bf16.msra.mxu0 0
        %1762 = vmatprep.subr.bf16.mxu0 0
        %1763 = vmatpush1.bf16.msra.mxu0 0
        %1764 = vmatprep.subr.bf16.mxu0 0
        %1765 = vmatpush1.bf16.msra.mxu0 0
        %1766 = vmatprep.mubr.bf16.mxu0 0
        %1767 = vmatmul.mubr.bf16.gmra.mrb[0].mxu0 %v1729
        %v1768 = vpop.f32.mrb[0].mxu0
        %v1769 = vadd.f32 0.0, %v1768
        %v1770 = vpop.f32.mrb[0].mxu0
        %v1771 = vpop.f32.mrb[0].mxu0
        %v1772 = vpop.f32.mrb[0].mxu0
        %1773 = vdwg.mxu0
        %v1774 = vadd.f32 %v1614, %v1769
        %v1775 = vadd.f32 %v807, %v1774
        %v1776 = vsel %vm819, %v1775, 0.0
        %1777 = vadd.xlane.f32.xlu0 %v1776
        %v1778 = vpop.xlane.xlu0 %1777
        %v1779 = vmul.f32 %v1778, %v928
        %v1780 = vsub.f32 %v1775, %v1779
        %v1781 = vmul.f32 %v1780, %v1780
        %v1782 = vsel %vm819, %v1781, 0.0
        %1783 = vadd.xlane.f32.xlu0 %v1782
        %v1784 = vpop.xlane.xlu0 %1783
        %v1785 = vmul.f32 %v1784, %v935
        %v1786 = vld [vmem:[#allocation13] sm:$0x1]
        %v1788 = vlaneseq
        %v1789 = vshrl.u32 %v1788, 7
        %v1790 = vsub.s32 0, %v1789
        %v1791 = vrot.slane %v1786, %v1790
        %v1793 = vmul.f32 %v1791, %v1780
        %v1794 = vrsqrt.pop %v1785
        %v1795 = vmul.f32 %v1785, %v1794
        %vm1796 = vcmp.eq.f32.partialorder %v1785, inf
        %v1797 = vsel %vm1796, %v1785, %v1795
        %vm1798 = vcmp.eq.f32.partialorder %v1785, 0.0
        %v1799 = vand.u32 %v1785, 2147483648
        %v1800 = vsel %vm1798, %v1799, %v1797
        %v1801 = vadd.f32 %v1800, 1e-06
        %v1802 = vrcp.pop %v1801
        %v1803 = vmul.f32 %v1793, %v1802
        %v1804 = vld [vmem:[%s10] sm:$0x1]
        %v1806 = vlaneseq
        %v1807 = vshrl.u32 %v1806, 7
        %v1808 = vsub.s32 0, %v1807
        %v1809 = vrot.slane %v1804, %v1808
        %v1811 = vadd.f32 %v1803, %v1809
        %v1812 = vpack.c.bf16 %v1811, %v1811
        %v1813 = vld [vmem:[%s15] sm:$0xf]
        %v1814 = vld [vmem:[%s15 + $0x4] sm:$0xf]
        %v1815 = vld [vmem:[%s15 + $0x8] sm:$0xf]
        %v1816 = vld [vmem:[%s15 + $0xc] sm:$0xf]
        %v1817 = vld [vmem:[%s16] sm:$0x1]
        %v1819 = vlaneseq
        %v1820 = vshrl.u32 %v1819, 7
        %v1821 = vsub.s32 0, %v1820
        %v1822 = vrot.slane %v1817, %v1821
        %v1828 = vunpack.c.l.b16 %v1813
        %v1829 = vunpack.c.l.b16 %v1814
        %v1830 = vunpack.c.l.b16 %v1815
        %v1831 = vunpack.c.l.b16 %v1816
        %v1832 = vpack.c.b16 %v1829, %v1828
        %v1833 = vpack.c.b16 %v1831, %v1830
        %v1837 = vsel %vm819, %v1812, 0
        %1839 = vmatprep.subr.bf16.mxu0 0
        %1840 = vmatpush1.bf16.msra.mxu0 %v1832
        %1841 = vmatprep.subr.bf16.mxu0 0
        %1842 = vmatpush1.bf16.msra.mxu0 %v1833
        %1843 = vmatprep.subr.bf16.mxu0 0
        %1844 = vmatpush1.bf16.msra.mxu0 0
        %1845 = vmatprep.subr.bf16.mxu0 0
        %1846 = vmatpush1.bf16.msra.mxu0 0
        %1847 = vmatprep.subr.bf16.mxu0 0
        %1848 = vmatpush1.bf16.msra.mxu0 0
        %1849 = vmatprep.subr.bf16.mxu0 0
        %1850 = vmatpush1.bf16.msra.mxu0 0
        %1851 = vmatprep.subr.bf16.mxu0 0
        %1852 = vmatpush1.bf16.msra.mxu0 0
        %1853 = vmatprep.subr.bf16.mxu0 0
        %1854 = vmatpush1.bf16.msra.mxu0 0
        %1855 = vmatprep.subr.bf16.mxu0 0
        %1856 = vmatpush1.bf16.msra.mxu0 0
        %1857 = vmatprep.subr.bf16.mxu0 0
        %1858 = vmatpush1.bf16.msra.mxu0 0
        %1859 = vmatprep.subr.bf16.mxu0 0
        %1860 = vmatpush1.bf16.msra.mxu0 0
        %1861 = vmatprep.subr.bf16.mxu0 0
        %1862 = vmatpush1.bf16.msra.mxu0 0
        %1863 = vmatprep.subr.bf16.mxu0 0
        %1864 = vmatpush1.bf16.msra.mxu0 0
        %1865 = vmatprep.subr.bf16.mxu0 0
        %1866 = vmatpush1.bf16.msra.mxu0 0
        %1867 = vmatprep.subr.bf16.mxu0 0
        %1868 = vmatpush1.bf16.msra.mxu0 0
        %1869 = vmatprep.subr.bf16.mxu0 0
        %1870 = vmatpush1.bf16.msra.mxu0 0
        %1871 = vmatprep.mubr.bf16.mxu0 0
        %1872 = vmatmul.mubr.bf16.gmra.mrb[0].mxu0 %v1837
        %v1873 = vpop.f32.mrb[0].mxu0
        %v1874 = vadd.f32 %v1822, %v1873
        %v1875 = vpop.f32.mrb[0].mxu0
        %v1876 = vpop.f32.mrb[0].mxu0
        %v1877 = vpop.f32.mrb[0].mxu0
        %1878 = vdwg.mxu0
        %v1879 = vmax.f32 %v1874, 0.0
        %v1880 = vpack.c.bf16 %v1879, %v1879
        %v1881 = vld [vmem:[%s17] sm:$0xf]
        %v1882 = vld [vmem:[%s17 + $0x4] sm:$0xf]
        %v1883 = vld [vmem:[%s17 + $0x8] sm:$0xf]
        %v1884 = vld [vmem:[%s17 + $0xc] sm:$0xf]
        %v1885 = vld [vmem:[%s17 + $0x10] sm:$0xf]
        %v1886 = vld [vmem:[%s17 + $0x14] sm:$0xf]
        %v1887 = vld [vmem:[%s17 + $0x18] sm:$0xf]
        %v1888 = vld [vmem:[%s17 + $0x1c] sm:$0xf]
        %v1897 = vunpack.c.l.b16 %v1881
        %v1898 = vunpack.c.l.b16 %v1882
        %v1899 = vunpack.c.l.b16 %v1883
        %v1900 = vunpack.c.l.b16 %v1884
        %v1901 = vunpack.c.l.b16 %v1885
        %v1902 = vunpack.c.l.b16 %v1886
        %v1903 = vunpack.c.l.b16 %v1887
        %v1904 = vunpack.c.l.b16 %v1888
        %v1905 = vpack.c.b16 %v1898, %v1897
        %v1906 = vpack.c.b16 %v1900, %v1899
        %v1907 = vpack.c.b16 %v1902, %v1901
        %v1908 = vpack.c.b16 %v1904, %v1903
        %vm1913 = vcmask 523264
        %v1915 = vsel %vm1913, %v1880, 0
        %1917 = vmatprep.subr.bf16.mxu0 0
        %1918 = vmatpush1.bf16.msra.mxu0 %v1905
        %1919 = vmatprep.subr.bf16.mxu0 0
        %1920 = vmatpush1.bf16.msra.mxu0 %v1906
        %1921 = vmatprep.subr.bf16.mxu0 0
        %1922 = vmatpush1.bf16.msra.mxu0 %v1907
        %1923 = vmatprep.subr.bf16.mxu0 0
        %1924 = vmatpush1.bf16.msra.mxu0 %v1908
        %1925 = vmatprep.subr.bf16.mxu0 0
        %1926 = vmatpush1.bf16.msra.mxu0 0
        %1927 = vmatprep.subr.bf16.mxu0 0
        %1928 = vmatpush1.bf16.msra.mxu0 0
        %1929 = vmatprep.subr.bf16.mxu0 0
        %1930 = vmatpush1.bf16.msra.mxu0 0
        %1931 = vmatprep.subr.bf16.mxu0 0
        %1932 = vmatpush1.bf16.msra.mxu0 0
        %1933 = vmatprep.subr.bf16.mxu0 0
        %1934 = vmatpush1.bf16.msra.mxu0 0
        %1935 = vmatprep.subr.bf16.mxu0 0
        %1936 = vmatpush1.bf16.msra.mxu0 0
        %1937 = vmatprep.subr.bf16.mxu0 0
        %1938 = vmatpush1.bf16.msra.mxu0 0
        %1939 = vmatprep.subr.bf16.mxu0 0
        %1940 = vmatpush1.bf16.msra.mxu0 0
        %1941 = vmatprep.subr.bf16.mxu0 0
        %1942 = vmatpush1.bf16.msra.mxu0 0
        %1943 = vmatprep.subr.bf16.mxu0 0
        %1944 = vmatpush1.bf16.msra.mxu0 0
        %1945 = vmatprep.subr.bf16.mxu0 0
        %1946 = vmatpush1.bf16.msra.mxu0 0
        %1947 = vmatprep.subr.bf16.mxu0 0
        %1948 = vmatpush1.bf16.msra.mxu0 0
        %1949 = vmatprep.mubr.bf16.mxu0 0
        %1950 = vmatmul.mubr.bf16.gmra.mrb[0].mxu0 %v1915
        %v1951 = vpop.f32.mrb[0].mxu0
        %v1952 = vadd.f32 0.0, %v1951
        %v1953 = vpop.f32.mrb[0].mxu0
        %v1954 = vpop.f32.mrb[0].mxu0
        %v1955 = vpop.f32.mrb[0].mxu0
        %1956 = vdwg.mxu0
        %v1957 = vadd.f32 %v1775, %v1952
        %v1958 = vld [vmem:[%s18] sm:$0x1]
        %v1960 = vlaneseq
        %v1961 = vshrl.u32 %v1960, 7
        %v1962 = vsub.s32 0, %v1961
        %v1963 = vrot.slane %v1958, %v1962
        %v1965 = vadd.f32 %v1957, %v1963
        %1967 = vset.pattern.permute.xlu0 0
        %1968 = vperm.xlu0 %1967, %v924
        %v1969 = vpop.permute.xlu0 %1968
        %v1971 = vmul.f32 %v1965, %v1969
        %v1972 = vld [vmem:[%s709] sm:$0xff]
        %v1973 = vsub.f32 1.0, %v924
        %1975 = vset.pattern.permute.xlu0 0
        %1976 = vperm.xlu0 %1975, %v1973
        %v1977 = vpop.permute.xlu0 %1976
        %v1979 = vmul.f32 %v1972, %v1977
        %v1980 = vadd.f32 %v1971, %v1979
        %1981 = vst.msk [vmem:[%s709] sm:$0xff] %vm819, %v1980
        %1982 = vst.msk [vmem:[#allocation2] sm:$0xff] %vm819, %v1965
        %vm1983 = vcmask 7168
        %1984 = vst.msk [vmem:[#allocation3] sm:$0xff] %vm1983, %v920
        %1985 = vst.msk [vmem:[#allocation4] sm:$0xff] %vm1983, %v918
        %1986 = vst.msk [vmem:[#allocation5] sm:$0xff] %vm1983, %v923
        %p1987 = scmp.eq.s32.totalorder %s47, 2
        // Predicated region
        $region117: #{tpu_custom_call.1} parent=95 // pred_check
          %p1988 = pneg %p1987
        $region118: #{tpu_custom_call.1} parent=95 // pred_check_branch
          %1990 = sbr.rel (%p1988) target = $region120
        $region119: #{tpu_custom_call.1} parent=95 // pred_region
          %1991 = vst.msk [vmem:[%s723] sm:$0xff] %vm1983, %v918
          %1993 = vrot.lane.b32.xlu0 %v923, 1
          %v1994 = vpop.permute.xlu0 %1993
          %vm1996 = vcmask 15368
          %1997 = vst.msk [vmem:[%s723] sm:$0xff] %vm1996, %v1994
        $region120: #{tpu_custom_call.1} parent=95 // pred_fallthru
          _
        %s1998 = sand.u32 %s471, 1
        %s1999 = scalar_lea.sflag [#allocation9], %s1998
        %s2000 = sand.u32 %s471, 1
        %s2001 = smul.addr %s2000, 8
        %s2002 = scalar_lea.vmem [#allocation15], %s2001
        %p2003 = scmp.lt.s32.totalorder %s46, 1
        %s2004 = scalar_select %p2003, %s46, 1
        %s2005 = smul.addr %s2004, 8
        %s2006 = scalar_lea.vmem %s20, %s2005
        // Predicated region
        $region121: #{tpu_custom_call.1} parent=95 // pred_check
          %p2007 = pneg %p481
        $region122: #{tpu_custom_call.1} parent=95 // pred_check_branch
          %2009 = sbr.rel (%p2007) target = $region124
        $region123: #{tpu_custom_call.1} parent=95 // pred_region
          %s2011 = ssub.s32 128, 128
          %2012 = vsyncadd %s1999, %s2011
          %s2013 = smul.addr %s46, 128
          %s2014 = scalar_lea.hbm %s19, %s2013
          %s2016 = sshll.u32 %s2002, 4
          %s2017 = int_to_ptr.vmem [resolvable:$true] %s2016
          %2019 = dma.vmem_to_hbm [thread:$0]  %s2017, 128, %s2014, %s1999
        $region124: #{tpu_custom_call.1} parent=95 // pred_fallthru
          _
        // Predicated region
        $region125: #{tpu_custom_call.1} parent=95 // pred_check
          %p2020 = pneg %p507
        $region126: #{tpu_custom_call.1} parent=95 // pred_check_branch
          %2022 = sbr.rel (%p2020) target = $region128
        $region127: #{tpu_custom_call.1} parent=95 // pred_region
          _
        $region128: #{tpu_custom_call.1} parent=95 // pred_fallthru
          _
      $region96: #{tpu_custom_call.1} parent=5 // pred_fallthru
        _
      %p2023 = scmp.le.s32.totalorder 2, %s37
      // Predicated region
      $region129: #{tpu_custom_call.1} parent=5 // pred_check
        %p2024 = pneg %p2023
      $region130: #{tpu_custom_call.1} parent=5 // pred_check_branch
        %2026 = sbr.rel (%p2024) target = $region132
      $region131: #{tpu_custom_call.1} parent=5 // pred_region
        %s2027 = ssub.s32 %s37, 2
        // Predicated region
        $region133: #{tpu_custom_call.1} parent=131 // pred_check
          %p2028 = pneg %p487
        $region134: #{tpu_custom_call.1} parent=131 // pred_check_branch
          %2030 = sbr.rel (%p2028) target = $region136
        $region135: #{tpu_custom_call.1} parent=131 // pred_region
          %s2031 = sand.u32 %s472, 1
          %s2032 = scalar_lea.sflag [#allocation9], %s2031
          %s2033 = sand.u32 %s472, 1
          %s2034 = smul.addr %s2033, 8
          %s2035 = scalar_lea.vmem [#allocation15], %s2034
          %2036 = dma.done %s2032, 128
        $region136: #{tpu_custom_call.1} parent=131 // pred_fallthru
          _
        // Predicated region
        $region137: #{tpu_custom_call.1} parent=131 // pred_check
          %p2037 = pneg %p513
        $region138: #{tpu_custom_call.1} parent=131 // pred_check_branch
          %2039 = sbr.rel (%p2037) target = $region140
        $region139: #{tpu_custom_call.1} parent=131 // pred_region
          %p2040 = scmp.lt.s32.totalorder %s48, 1
          %s2041 = scalar_select %p2040, %s48, 1
          %s2042 = smul.addr %s2041, 8
          %s2043 = scalar_lea.vmem %s20, %s2042
        $region140: #{tpu_custom_call.1} parent=131 // pred_fallthru
          _
      $region132: #{tpu_custom_call.1} parent=5 // pred_fallthru
        _
    $region6: #{tpu_custom_call.1} parent=1 // loop_footer
      %s41 = sadd.s32 1, %s37
    $region7: #{tpu_custom_call.1} parent=1 // loop_footer_branch
      %36 = sbr.rel target = $region3
    $region8: #{tpu_custom_call.1} parent=1 // loop_exit
      _
    %2044 = vsyncpa [#allocation8], 1
    %s2045 = scalar_lea.sflag [#allocation8], 1
    %2046 = vsyncpa %s2045, 1
    %2047 = vsyncpa [#allocation11], 1
    %s2048 = scalar_lea.sflag [#allocation11], 1
    %2049 = vsyncpa %s2048, 1
    %2050 = vsyncpa [#allocation14], 1
    %2051 = vsyncpa [#allocation9], 1
    %s2052 = scalar_lea.sflag [#allocation9], 1
    %2053 = vsyncpa %s2052, 1

</llo_original>
